<compile_context>
chip_gen: v7x
topology: tpu7x:2x2x1
jax: 0.10.0
libtpu: 0.0.40
codegen_flags: <defaults>
</compile_context>

<pallas_src>
import functools
import math

import jax
import jax.numpy as jnp
from jax.experimental import pallas as pl
from jax.experimental.pallas import tpu as pltpu

_INV_SQRT2 = 0.7071067811865476  # 1/sqrt(2)


def _projector_kernel(x_ref, w1_ref, b1_ref, w2_ref, b2_ref, o_ref,
                      acc_ref, g_ref):
    """One (row-tile, out-col-tile, k-tile) step of Linear -> GELU -> Linear."""
    j = pl.program_id(1)          # output-column tile of the second linear
    k = pl.program_id(2)          # reduction tile over d_lang (innermost)
    nk = pl.num_programs(2)

    @pl.when(k == 0)
    def _init():
        acc_ref[...] = jnp.zeros_like(acc_ref)

    # First linear + exact (erf) GELU for this K chunk.  Computed once per row
    # tile (on the first out-col sweep) and cached in VMEM for the remaining j.
    @pl.when(j == 0)
    def _first_linear():
        h = jnp.dot(x_ref[...], w1_ref[...],
                    preferred_element_type=jnp.float32)
        h = h + b1_ref[...].astype(jnp.float32)
        g = 0.5 * h * (1.0 + jax.lax.erf(h * _INV_SQRT2))
        g_ref[k] = g.astype(g_ref.dtype)

    # Second linear: accumulate over K chunks in f32 on the MXU.
    acc_ref[...] += jnp.dot(g_ref[k], w2_ref[...],
                            preferred_element_type=jnp.float32)

    @pl.when(k == nk - 1)
    def _finalize():
        o_ref[...] = (acc_ref[...]
                      + b2_ref[...].astype(jnp.float32)).astype(o_ref.dtype)


def _round_up(x, m):
    return -(-x // m) * m


def _fit_tile(dim, want, align=128):
    """Largest tile <= `want` that is a multiple of `align` and divides `dim`,
    falling back to the full dimension when no aligned divisor exists."""
    if dim <= want or dim <= align:
        return dim
    t = (min(want, dim) // align) * align
    while t >= align:
        if dim % t == 0:
            return t
        t -= align
    return dim


def _working_set_bytes(tm, tn, tk, d_vis, d_lang, itemsize):
    """Approx VMEM footprint: double-buffered in/out tiles + scratch."""
    nk = max(1, d_lang // tk)
    ws = 2 * (tm * d_vis            # x tile
              + d_vis * tk + tk     # W1 tile + b1 chunk
              + tk * tn + tn        # W2 tile + b2 chunk
              + tm * tn) * itemsize # output tile
    ws += tm * tn * 4               # f32 accumulator
    ws += nk * tm * tk * itemsize   # cached GELU output for the row tile
    return ws


def _has_two_tensorcores():
    """Best-effort detection of megacore-style chips (2 TCs behind 1 device)."""
    try:
        kind = jax.devices()[0].device_kind.lower()
    except Exception:
        return False
    return any(t in kind for t in ("v7", "v4", "v5p"))


@functools.partial(jax.jit, static_argnames=("tm", "tn", "tk"))
def mm_projector(x, w1, b1, w2, b2, *, tm=256, tn=2048, tk=1024):
    """x:  [N, D_vis]   vision hidden states (any float dtype, e.g. bf16)
    w1: [D_lang, D_vis], b1: [D_lang]   (PyTorch Linear layout)
    w2: [D_lang, D_lang], b2: [D_lang]
    returns: [N, D_lang]
    """
    N, d_vis = x.shape
    d_lang = w1.shape[0]
    itemsize = jnp.dtype(x.dtype).itemsize

    # Torch Linear layout -> x @ W + b layout.
    w1_t = w1.T                       # [D_vis, D_lang]
    w2_t = w2.T                       # [D_lang, D_lang]
    b1_2d = b1.reshape(1, d_lang)
    b2_2d = b2.reshape(1, d_lang)

    # Sublane packing for the input dtype (8 f32 / 16 bf16 / 32 int8-fp8).
    pack = max(8, 32 // itemsize)

    # Row tile: never larger than the (pack-rounded) token count.
    tm = max(pack, min(tm, _round_up(N, pack)))
    tm = _round_up(tm, pack)

    # Megacore balance (v4 / v5p / v7x): keep the row-tile count even so the
    # "parallel" row axis splits evenly across the two TensorCores.
    row_tiles = -(-N // tm)
    if row_tiles > 1 and row_tiles % 2 == 1 and _has_two_tensorcores():
        tm = max(pack, _round_up(-(-N // (row_tiles + 1)), pack))

    # Column / reduction tiles: lane-aligned divisors of d_lang, shrunk (tn
    # first, then tk, then tm) until the working set fits a v7x-safe budget
    # (64 MiB physical VMEM there; v5e/v6e have 128 MiB).
    budget = 44 << 20
    tn = _fit_tile(d_lang, tn)
    tk = _fit_tile(d_lang, tk)
    for _ in range(64):
        if _working_set_bytes(tm, tn, tk, d_vis, d_lang, itemsize) <= budget:
            break
        new_tn = _fit_tile(d_lang, max(128, tn // 2)) if tn > 128 else tn
        new_tk = _fit_tile(d_lang, max(128, tk // 2)) if tk > 128 else tk
        if new_tn < tn and tn >= tk:
            tn = new_tn
        elif new_tk < tk:
            tk = new_tk
        elif new_tn < tn:
            tn = new_tn
        elif tm > pack:
            tm = max(pack, _round_up(tm // 2, pack))
        else:
            break   # best effort; vmem_limit_bytes below is raised to match
    nk = d_lang // tk
    nj = d_lang // tn

    # Handle ragged token counts: pad rows up to the row tile, slice back after.
    n_pad = _round_up(N, tm)
    if n_pad != N:
        x = jnp.pad(x, ((0, n_pad - N), (0, 0)))
    n_row_tiles = n_pad // tm

    ws = _working_set_bytes(tm, tn, tk, d_vis, d_lang, itemsize)
    vmem_limit = int(min(max(32 << 20, ws + (8 << 20)), 100 << 20))

    cost = pl.CostEstimate(
        flops=int(2 * n_pad * (d_vis * d_lang + d_lang * d_lang)),
        transcendentals=int(n_pad * d_lang),
        bytes_accessed=int(itemsize * (
            n_pad * d_vis                                    # activations in
            + n_row_tiles * (d_vis * d_lang + d_lang * d_lang)  # W1/W2 per row tile
            + n_pad * d_lang                                 # output
            + 2 * d_lang)),                                  # biases
    )

    # W1 / b1 are only consumed on the j == 0 sweep; freeze their block index
    # at (0, nk-1) for j > 0 so Pallas skips the redundant DMAs (same-index
    # blocks are not re-fetched).
    last_k = nk - 1
    w1_map = lambda i, j, k: (0, jnp.where(j == 0, k, last_k))
    b1_map = lambda i, j, k: (0, jnp.where(j == 0, k, last_k))

    out = pl.pallas_call(
        _projector_kernel,
        out_shape=jax.ShapeDtypeStruct((n_pad, d_lang), x.dtype),
        grid_spec=pltpu.PrefetchScalarGridSpec(
            num_scalar_prefetch=0,
            grid=(n_row_tiles, nj, nk),
            in_specs=[
                pl.BlockSpec((tm, d_vis), lambda i, j, k: (i, 0)),   # x rows
                pl.BlockSpec((d_vis, tk), w1_map),                   # W1 K-cols
                pl.BlockSpec((1, tk),     b1_map),                   # b1 chunk
                pl.BlockSpec((tk, tn),    lambda i, j, k: (k, j)),   # W2 tile
                pl.BlockSpec((1, tn),     lambda i, j, k: (0, j)),   # b2 chunk
            ],
            out_specs=pl.BlockSpec((tm, tn), lambda i, j, k: (i, j)),
            scratch_shapes=[
                pltpu.VMEM((tm, tn), jnp.float32),     # f32 accumulator
                pltpu.VMEM((nk, tm, tk), x.dtype),     # cached GELU output
            ],
        ),
        compiler_params=pltpu.CompilerParams(
            dimension_semantics=("parallel", "arbitrary", "arbitrary"),
            vmem_limit_bytes=vmem_limit),
        cost_estimate=cost,
    )(x, w1_t, b1_2d, w2_t, b2_2d)

    return out[:N]


def _reference(x, w1, b1, w2, b2):
    xf = x.astype(jnp.float32)
    h = xf @ w1.T.astype(jnp.float32) + b1.astype(jnp.float32)
    g = 0.5 * h * (1.0 + jax.lax.erf(h / jnp.sqrt(2.0)))
    y = g @ w2.T.astype(jnp.float32) + b2.astype(jnp.float32)
    return y


if __name__ == "__main__":
    key = jax.random.PRNGKey(0)
    k_x, k_w1, k_b1, k_w2, k_b2 = jax.random.split(key, 5)

    # Small shapes consistent with the module; N is deliberately ragged
    # (not a tile multiple) to exercise the padding path.
    N, D_VIS, D_LANG = 200, 256, 512

    x = jax.random.normal(k_x, (N, D_VIS), dtype=jnp.float32)
    # Deterministic parameter init (PyTorch Linear layout: [out, in]).
    w1 = jax.random.normal(k_w1, (D_LANG, D_VIS), dtype=jnp.float32) * (1.0 / math.sqrt(D_VIS))
    b1 = jax.random.normal(k_b1, (D_LANG,), dtype=jnp.float32) * 0.01
    w2 = jax.random.normal(k_w2, (D_LANG, D_LANG), dtype=jnp.float32) * (1.0 / math.sqrt(D_LANG))
    b2 = jax.random.normal(k_b2, (D_LANG,), dtype=jnp.float32) * 0.01

    # f32 path: small tiles so the test exercises all three grid axes
    # (rows, out_cols, k) including the frozen W1/b1 index path.
    out = mm_projector(x, w1, b1, w2, b2, tm=128, tn=256, tk=256)
    out = jax.block_until_ready(out)
    ref = _reference(x, w1, b1, w2, b2).astype(jnp.float32)
    assert out.shape == (N, D_LANG)
    assert jnp.allclose(out.astype(jnp.float32), ref, atol=1e-3, rtol=1e-3), \
        "f32 mismatch vs pure-JAX reference"

    # bf16 path (production dtype): same values quantized, looser tolerance
    # since the GELU cache and output round-trip through bf16.
    xb, w1b, b1b = x.astype(jnp.bfloat16), w1.astype(jnp.bfloat16), b1.astype(jnp.bfloat16)
    w2b, b2b = w2.astype(jnp.bfloat16), b2.astype(jnp.bfloat16)
    out_b = mm_projector(xb, w1b, b1b, w2b, b2b, tm=64, tn=256, tk=256)
    out_b = jax.block_until_ready(out_b)
    ref_b = _reference(xb, w1b, b1b, w2b, b2b)
    assert out_b.shape == (N, D_LANG)
    assert jnp.allclose(out_b.astype(jnp.float32), ref_b, atol=0.1, rtol=0.05), \
        "bf16 mismatch vs pure-JAX reference"

    print("KERNEL_OK")
</pallas_src>

<mosaic_0001>
module attributes {stable_mosaic.version = 11 : i64} {
  func.func @_projector_kernel(%arg0: i32, %arg1: i32, %arg2: i32, %arg3: memref<128x256xf32, #tpu.memory_space<vmem>>, %arg4: memref<256x256xf32, #tpu.memory_space<vmem>>, %arg5: memref<1x256xf32, #tpu.memory_space<vmem>>, %arg6: memref<256x256xf32, #tpu.memory_space<vmem>>, %arg7: memref<1x256xf32, #tpu.memory_space<vmem>>, %arg8: memref<128x256xf32, #tpu.memory_space<vmem>>, %arg9: memref<128x256xf32, #tpu.memory_space<vmem>>, %arg10: memref<2x128x256xf32, #tpu.memory_space<vmem>>) attributes {dimension_semantics = [#tpu.dimension_semantics<parallel>, #tpu.dimension_semantics<arbitrary>, #tpu.dimension_semantics<arbitrary>], iteration_bounds = array<i64: 2, 2, 2>, scalar_prefetch = 0 : i64, scratch_operands = 2 : i64, tpu.core_type = #tpu.core_type<tc>, window_params = [{transform_indices = @transform_0, window_bounds = array<i64: 128, 256>}, {transform_indices = @transform_1, window_bounds = array<i64: 256, 256>}, {transform_indices = @transform_2, window_bounds = array<i64: 1, 256>}, {transform_indices = @transform_3, window_bounds = array<i64: 256, 256>}, {transform_indices = @transform_4, window_bounds = array<i64: 1, 256>}, {transform_indices = @transform_5, window_bounds = array<i64: 128, 256>}]} {
    %c0_i32 = arith.constant 0 : i32
    %0 = arith.cmpi eq, %arg2, %c0_i32 : i32
    %1 = arith.extui %0 : i1 to i32
    %c0_i32_0 = arith.constant 0 : i32
    %2 = arith.cmpi ne, %1, %c0_i32_0 : i32
    scf.if %2 {
      %cst_11 = arith.constant 0.000000e+00 : f32
      %17 = vector.broadcast %cst_11 : f32 to vector<128x256xf32>
      %c0_12 = arith.constant 0 : index
      %c0_13 = arith.constant 0 : index
      %18 = vector.load %arg9[%c0_12, %c0_13] : memref<128x256xf32, #tpu.memory_space<vmem>>, vector<128x256xf32>
      tpu.vector_store %arg9[%c0_12, %c0_13], %17 {strides = array<i32>} : memref<128x256xf32, #tpu.memory_space<vmem>>, vector<128x256xf32>,
    } else {
    }
    %c0_i32_1 = arith.constant 0 : i32
    %3 = arith.cmpi eq, %arg1, %c0_i32_1 : i32
    %4 = arith.extui %3 : i1 to i32
    %c0_i32_2 = arith.constant 0 : i32
    %5 = arith.cmpi ne, %4, %c0_i32_2 : i32
    scf.if %5 {
      %c0_11 = arith.constant 0 : index
      %c0_12 = arith.constant 0 : index
      %17 = vector.load %arg3[%c0_11, %c0_12] : memref<128x256xf32, #tpu.memory_space<vmem>>, vector<128x256xf32>
      %c0_13 = arith.constant 0 : index
      %c0_14 = arith.constant 0 : index
      %18 = vector.load %arg4[%c0_13, %c0_14] : memref<256x256xf32, #tpu.memory_space<vmem>>, vector<256x256xf32>
      %cst_15 = arith.constant dense<0.000000e+00> : vector<128x256xf32>
      %19 = tpu.matmul %17, %18, %cst_15 {dimension_numbers = #tpu.dot_dimension_numbers<[1], [0], [0], [1], [0, 0, 1, 1], [], []>} : vector<128x256xf32>, vector<256x256xf32>, vector<128x256xf32> -> vector<128x256xf32>
      %c0_16 = arith.constant 0 : index
      %c0_17 = arith.constant 0 : index
      %20 = vector.load %arg5[%c0_16, %c0_17] : memref<1x256xf32, #tpu.memory_space<vmem>>, vector<1x256xf32>
      %21 = vector.broadcast %20 : vector<1x256xf32> to vector<128x256xf32>
      %22 = arith.addf %19, %21 : vector<128x256xf32>
      %cst_18 = arith.constant 5.000000e-01 : f32
      %23 = vector.broadcast %cst_18 : f32 to vector<128x256xf32>
      %24 = arith.mulf %23, %22 : vector<128x256xf32>
      %cst_19 = arith.constant 0.707106769 : f32
      %25 = vector.broadcast %cst_19 : f32 to vector<128x256xf32>
      %26 = arith.mulf %22, %25 : vector<128x256xf32>
      %27 = math.erf %26 : vector<128x256xf32>
      %cst_20 = arith.constant 1.000000e+00 : f32
      %28 = vector.broadcast %cst_20 : f32 to vector<128x256xf32>
      %29 = arith.addf %28, %27 : vector<128x256xf32>
      %30 = arith.mulf %24, %29 : vector<128x256xf32>
      %31 = arith.index_cast %arg2 : i32 to index
      %c0_21 = arith.constant 0 : index
      %c0_22 = arith.constant 0 : index
      %32 = vector.load %arg10[%31, %c0_21, %c0_22] : memref<2x128x256xf32, #tpu.memory_space<vmem>>, vector<1x128x256xf32>
      %33 = vector.shape_cast %32 : vector<1x128x256xf32> to vector<128x256xf32>
      %34 = vector.shape_cast %30 : vector<128x256xf32> to vector<1x128x256xf32>
      tpu.vector_store %arg10[%31, %c0_21, %c0_22], %34 {strides = array<i32>} : memref<2x128x256xf32, #tpu.memory_space<vmem>>, vector<1x128x256xf32>,
    } else {
    }
    %c0 = arith.constant 0 : index
    %c0_3 = arith.constant 0 : index
    %6 = vector.load %arg9[%c0, %c0_3] : memref<128x256xf32, #tpu.memory_space<vmem>>, vector<128x256xf32>
    %7 = arith.index_cast %arg2 : i32 to index
    %c0_4 = arith.constant 0 : index
    %c0_5 = arith.constant 0 : index
    %8 = vector.load %arg10[%7, %c0_4, %c0_5] : memref<2x128x256xf32, #tpu.memory_space<vmem>>, vector<1x128x256xf32>
    %9 = vector.shape_cast %8 : vector<1x128x256xf32> to vector<128x256xf32>
    %c0_6 = arith.constant 0 : index
    %c0_7 = arith.constant 0 : index
    %10 = vector.load %arg6[%c0_6, %c0_7] : memref<256x256xf32, #tpu.memory_space<vmem>>, vector<256x256xf32>
    %cst = arith.constant dense<0.000000e+00> : vector<128x256xf32>
    %11 = tpu.matmul %9, %10, %cst {dimension_numbers = #tpu.dot_dimension_numbers<[1], [0], [0], [1], [0, 0, 1, 1], [], []>} : vector<128x256xf32>, vector<256x256xf32>, vector<128x256xf32> -> vector<128x256xf32>
    %12 = arith.addf %6, %11 : vector<128x256xf32>
    %c0_8 = arith.constant 0 : index
    %c0_9 = arith.constant 0 : index
    %13 = vector.load %arg9[%c0_8, %c0_9] : memref<128x256xf32, #tpu.memory_space<vmem>>, vector<128x256xf32>
    tpu.vector_store %arg9[%c0_8, %c0_9], %12 {strides = array<i32>} : memref<128x256xf32, #tpu.memory_space<vmem>>, vector<128x256xf32>,
    %c1_i32 = arith.constant 1 : i32
    %14 = arith.cmpi eq, %arg2, %c1_i32 : i32
    %15 = arith.extui %14 : i1 to i32
    %c0_i32_10 = arith.constant 0 : i32
    %16 = arith.cmpi ne, %15, %c0_i32_10 : i32
    scf.if %16 {
      %c0_11 = arith.constant 0 : index
      %c0_12 = arith.constant 0 : index
      %17 = vector.load %arg9[%c0_11, %c0_12] : memref<128x256xf32, #tpu.memory_space<vmem>>, vector<128x256xf32>
      %c0_13 = arith.constant 0 : index
      %c0_14 = arith.constant 0 : index
      %18 = vector.load %arg7[%c0_13, %c0_14] : memref<1x256xf32, #tpu.memory_space<vmem>>, vector<1x256xf32>
      %19 = vector.broadcast %18 : vector<1x256xf32> to vector<128x256xf32>
      %20 = arith.addf %17, %19 : vector<128x256xf32>
      %c0_15 = arith.constant 0 : index
      %c0_16 = arith.constant 0 : index
      %21 = vector.load %arg8[%c0_15, %c0_16] : memref<128x256xf32, #tpu.memory_space<vmem>>, vector<128x256xf32>
      tpu.vector_store %arg8[%c0_15, %c0_16], %20 {strides = array<i32>} : memref<128x256xf32, #tpu.memory_space<vmem>>, vector<128x256xf32>,
    } else {
    }
    return
  }
  func.func @transform_0(%arg0: i32, %arg1: i32, %arg2: i32) -> (i32, i32) {
    %c0_i32 = arith.constant 0 : i32
    %c0_i32_0 = arith.constant 0 : i32
    return %arg0, %c0_i32 : i32, i32
  }
  func.func @transform_1(%arg0: i32, %arg1: i32, %arg2: i32) -> (i32, i32) {
    %c0_i32 = arith.constant 0 : i32
    %0 = arith.cmpi eq, %arg1, %c0_i32 : i32
    %c1_i32 = arith.constant 1 : i32
    %1 = arith.select %0, %arg2, %c1_i32 : i32
    %c0_i32_0 = arith.constant 0 : i32
    %c0_i32_1 = arith.constant 0 : i32
    return %c0_i32_0, %1 : i32, i32
  }
  func.func @transform_2(%arg0: i32, %arg1: i32, %arg2: i32) -> (i32, i32) {
    %c0_i32 = arith.constant 0 : i32
    %0 = arith.cmpi eq, %arg1, %c0_i32 : i32
    %c1_i32 = arith.constant 1 : i32
    %1 = arith.select %0, %arg2, %c1_i32 : i32
    %c0_i32_0 = arith.constant 0 : i32
    %c0_i32_1 = arith.constant 0 : i32
    return %c0_i32_0, %1 : i32, i32
  }
  func.func @transform_3(%arg0: i32, %arg1: i32, %arg2: i32) -> (i32, i32) {
    %c0_i32 = arith.constant 0 : i32
    return %arg2, %arg1 : i32, i32
  }
  func.func @transform_4(%arg0: i32, %arg1: i32, %arg2: i32) -> (i32, i32) {
    %c0_i32 = arith.constant 0 : i32
    %c0_i32_0 = arith.constant 0 : i32
    return %c0_i32, %arg1 : i32, i32
  }
  func.func @transform_5(%arg0: i32, %arg1: i32, %arg2: i32) -> (i32, i32) {
    %c0_i32 = arith.constant 0 : i32
    return %arg0, %arg1 : i32, i32
  }
}

</mosaic_0001>

<llo_original>
// kernel: mm_projector.1
$region0: #{mm_projector.1}
  #allocation0 [shape = 'u32[]', space=smem, size = 0x4, offset = 0x4, fixed_abs, tag = 'smem constant byte address 0x4 - core index']
  #allocation1 [shape = 'u32[144,128]{1,0:T(1,128)}', space=vmem, size = 0x12000, scoped, tag = 'internal scratch']
  #allocation2 [shape = 'f32[128,256]{1,0:T(8,128)}', space=vmem, size = 0x20000, scoped, tag = 'scratch operand']
  #allocation3 [shape = 'f32[2,128,256]{2,1,0:T(8,128)}', space=vmem, size = 0x40000, scoped, tag = 'scratch operand']
  %s0 = inlined_call_operand.vmem [shape: f32[256,256], index: 0, kind: input, shape index: {}]
  %s1 = inlined_call_operand.vmem [shape: f32[256,512], index: 1, kind: input, shape index: {}]
  %s2 = inlined_call_operand.vmem [shape: f32[1,512], index: 2, kind: input, shape index: {}]
  %s3 = inlined_call_operand.vmem [shape: f32[512,512], index: 3, kind: input, shape index: {}]
  %s4 = inlined_call_operand.vmem [shape: f32[1,512], index: 4, kind: input, shape index: {}]
  %s5 = inlined_call_operand.vmem [shape: f32[256,512], index: 5, kind: output, shape index: {}]
  %s6 = sld [smem:[#allocation0]]
  $region130: #{mm_projector.1} parent=0
    _
  %s8 = ssub.s32 1, %s6
  %s9 = scalar_select 0, %s8, %s6
  $region1: #{mm_projector.1} parent=0
    #allocation4 [shape = 'u8[524288]{0}', space=vmem, size = 0x80000, scoped, tag = 'input window, operand 1']
    #allocation5 [shape = 'u8[524288]{0}', space=vmem, size = 0x80000, scoped, tag = 'input window, operand 3']
    #allocation6 [shape = 'u8[262144]{0}', space=vmem, size = 0x40000, scoped, tag = 'output window, operand 0']
    loop: start=0, step=1, limit=10
    $region2: #{mm_projector.1} parent=1 // loop_pre_header
      _
    $region3: #{mm_projector.1} parent=1 // loop_header
      %s11 = sphi 0, %s15
      %p12 = scmp.ge.s32.totalorder %s11, 10
      %s18 = sphi 0, %s37
      %s19 = sphi 0, %s33
      %s20 = sphi 0, %s29
      %s21 = sphi 0, %s18
      %s22 = sphi 0, %s19
      %s23 = sphi 0, %s20
      %s24 = sphi 0, %s21
      %s25 = sphi 0, %s22
      %s26 = sphi 0, %s23
      %s40 = sphi 0, %s42
      %s43 = sphi 0, %s40
      %s44 = sphi 0, %s43
      %s60 = sphi 0, %s44
      %s70 = sphi 0, %s72
      %s73 = sphi 0, %s70
      %s74 = sphi 0, %s73
      %s90 = sphi 0, %s74
      %s100 = sphi 0, %s102
      %s103 = sphi 0, %s100
      %s104 = sphi 0, %s103
      %s120 = sphi 0, %s104
      %s128 = sphi 0, %s130
      %s131 = sphi 0, %s128
      %s132 = sphi 0, %s131
      %s148 = sphi 0, %s132
      %s154 = sphi 0, %s156
      %s157 = sphi 0, %s154
      %s158 = sphi 0, %s157
      %s174 = sphi 0, %s158
      %s182 = sphi 0, %s184
      %s185 = sphi 0, %s182
      %s186 = sphi 0, %s185
      %s202 = sphi 0, %s186
    $region4: #{mm_projector.1} parent=1 // loop_header_branch
      %14 = sbr.rel (%p12) target = $region8
    $region5: #{mm_projector.1} parent=1 // loop_body
      %s16 = ssub.s32 %s11, 1
      %s17 = ssub.s32 %s11, 2
      %s27 = sadd.s32 1, %s20
      %p28 = scmp.ge.s32.totalorder %s27, 2
      %s29 = scalar_select %p28, 0, %s27
      %s30 = sadd.s32 1, %s19
      %s31 = scalar_select %p28, %s30, %s19
      %p32 = scmp.ge.s32.totalorder %s31, 2
      %s33 = scalar_select %p32, 0, %s31
      %s34 = sadd.s32 1, %s18
      %s35 = scalar_select %p32, %s34, %s18
      %p36 = scmp.ge.s32.totalorder %s35, 2
      %s37 = scalar_select %p36, 0, %s35
      %s38 = ssub.s32 %s18, %s37
      %p39 = scmp.eq.s32.totalorder %s38, 0
      %s41 = sadd.s32 %s40, 1
      %s42 = scalar_select %p39, %s40, %s41
      %p45 = pneg %p39
      %p46 = scmp.eq.s32.totalorder %s11, 7
      %p47 = por %p45, %p46
      %p48 = scmp.ne.s32.totalorder %s40, %s43
      %p49 = scmp.eq.s32.totalorder %s11, 0
      %p50 = por %p48, %p49
      %p51 = scmp.ne.s32.totalorder %s40, %s43
      %p52 = scmp.eq.s32.totalorder %s16, 7
      %p53 = por %p51, %p52
      %p54 = scmp.ne.s32.totalorder %s43, %s44
      %p55 = scmp.eq.s32.totalorder %s16, 0
      %p56 = por %p54, %p55
      %p57 = scmp.ne.s32.totalorder %s43, %s44
      %p58 = scmp.eq.s32.totalorder %s17, 7
      %p59 = por %p57, %p58
      %p61 = scmp.ne.s32.totalorder %s44, %s60
      %p62 = scmp.eq.s32.totalorder %s17, 0
      %p63 = por %p61, %p62
      %p64 = scmp.eq.s32.totalorder %s19, 0
      %s65 = scalar_select %p64, %s20, 1
      %p66 = scmp.eq.s32.totalorder %s33, 0
      %s67 = scalar_select %p66, %s29, 1
      %s68 = ssub.s32 %s65, %s67
      %p69 = scmp.eq.s32.totalorder %s68, 0
      %s71 = sadd.s32 %s70, 1
      %s72 = scalar_select %p69, %s70, %s71
      %p75 = pneg %p69
      %p76 = scmp.eq.s32.totalorder %s11, 7
      %p77 = por %p75, %p76
      %p78 = scmp.ne.s32.totalorder %s70, %s73
      %p79 = scmp.eq.s32.totalorder %s11, 0
      %p80 = por %p78, %p79
      %p81 = scmp.ne.s32.totalorder %s70, %s73
      %p82 = scmp.eq.s32.totalorder %s16, 7
      %p83 = por %p81, %p82
      %p84 = scmp.ne.s32.totalorder %s73, %s74
      %p85 = scmp.eq.s32.totalorder %s16, 0
      %p86 = por %p84, %p85
      %p87 = scmp.ne.s32.totalorder %s73, %s74
      %p88 = scmp.eq.s32.totalorder %s17, 7
      %p89 = por %p87, %p88
      %p91 = scmp.ne.s32.totalorder %s74, %s90
      %p92 = scmp.eq.s32.totalorder %s17, 0
      %p93 = por %p91, %p92
      %p94 = scmp.eq.s32.totalorder %s19, 0
      %s95 = scalar_select %p94, %s20, 1
      %p96 = scmp.eq.s32.totalorder %s33, 0
      %s97 = scalar_select %p96, %s29, 1
      %s98 = ssub.s32 %s95, %s97
      %p99 = scmp.eq.s32.totalorder %s98, 0
      %s101 = sadd.s32 %s100, 1
      %s102 = scalar_select %p99, %s100, %s101
      %p105 = pneg %p99
      %p106 = scmp.eq.s32.totalorder %s11, 7
      %p107 = por %p105, %p106
      %p108 = scmp.ne.s32.totalorder %s100, %s103
      %p109 = scmp.eq.s32.totalorder %s11, 0
      %p110 = por %p108, %p109
      %p111 = scmp.ne.s32.totalorder %s100, %s103
      %p112 = scmp.eq.s32.totalorder %s16, 7
      %p113 = por %p111, %p112
      %p114 = scmp.ne.s32.totalorder %s103, %s104
      %p115 = scmp.eq.s32.totalorder %s16, 0
      %p116 = por %p114, %p115
      %p117 = scmp.ne.s32.totalorder %s103, %s104
      %p118 = scmp.eq.s32.totalorder %s17, 7
      %p119 = por %p117, %p118
      %p121 = scmp.ne.s32.totalorder %s104, %s120
      %p122 = scmp.eq.s32.totalorder %s17, 0
      %p123 = por %p121, %p122
      %s124 = ssub.s32 %s20, %s29
      %s125 = ssub.s32 %s19, %s33
      %s126 = sor.u32 %s124, %s125
      %p127 = scmp.eq.s32.totalorder %s126, 0
      %s129 = sadd.s32 %s128, 1
      %s130 = scalar_select %p127, %s128, %s129
      %p133 = pneg %p127
      %p134 = scmp.eq.s32.totalorder %s11, 7
      %p135 = por %p133, %p134
      %p136 = scmp.ne.s32.totalorder %s128, %s131
      %p137 = scmp.eq.s32.totalorder %s11, 0
      %p138 = por %p136, %p137
      %p139 = scmp.ne.s32.totalorder %s128, %s131
      %p140 = scmp.eq.s32.totalorder %s16, 7
      %p141 = por %p139, %p140
      %p142 = scmp.ne.s32.totalorder %s131, %s132
      %p143 = scmp.eq.s32.totalorder %s16, 0
      %p144 = por %p142, %p143
      %p145 = scmp.ne.s32.totalorder %s131, %s132
      %p146 = scmp.eq.s32.totalorder %s17, 7
      %p147 = por %p145, %p146
      %p149 = scmp.ne.s32.totalorder %s132, %s148
      %p150 = scmp.eq.s32.totalorder %s17, 0
      %p151 = por %p149, %p150
      %s152 = ssub.s32 %s19, %s33
      %p153 = scmp.eq.s32.totalorder %s152, 0
      %s155 = sadd.s32 %s154, 1
      %s156 = scalar_select %p153, %s154, %s155
      %p159 = pneg %p153
      %p160 = scmp.eq.s32.totalorder %s11, 7
      %p161 = por %p159, %p160
      %p162 = scmp.ne.s32.totalorder %s154, %s157
      %p163 = scmp.eq.s32.totalorder %s11, 0
      %p164 = por %p162, %p163
      %p165 = scmp.ne.s32.totalorder %s154, %s157
      %p166 = scmp.eq.s32.totalorder %s16, 7
      %p167 = por %p165, %p166
      %p168 = scmp.ne.s32.totalorder %s157, %s158
      %p169 = scmp.eq.s32.totalorder %s16, 0
      %p170 = por %p168, %p169
      %p171 = scmp.ne.s32.totalorder %s157, %s158
      %p172 = scmp.eq.s32.totalorder %s17, 7
      %p173 = por %p171, %p172
      %p175 = scmp.ne.s32.totalorder %s158, %s174
      %p176 = scmp.eq.s32.totalorder %s17, 0
      %p177 = por %p175, %p176
      %s178 = ssub.s32 %s18, %s37
      %s179 = ssub.s32 %s19, %s33
      %s180 = sor.u32 %s178, %s179
      %p181 = scmp.eq.s32.totalorder %s180, 0
      %s183 = sadd.s32 %s182, 1
      %s184 = scalar_select %p181, %s182, %s183
      %p187 = pneg %p181
      %p188 = scmp.eq.s32.totalorder %s11, 7
      %p189 = por %p187, %p188
      %p190 = scmp.ne.s32.totalorder %s182, %s185
      %p191 = scmp.eq.s32.totalorder %s11, 0
      %p192 = por %p190, %p191
      %p193 = scmp.ne.s32.totalorder %s182, %s185
      %p194 = scmp.eq.s32.totalorder %s16, 7
      %p195 = por %p193, %p194
      %p196 = scmp.ne.s32.totalorder %s185, %s186
      %p197 = scmp.eq.s32.totalorder %s16, 0
      %p198 = por %p196, %p197
      %p199 = scmp.ne.s32.totalorder %s185, %s186
      %p200 = scmp.eq.s32.totalorder %s17, 7
      %p201 = por %p199, %p200
      %p203 = scmp.ne.s32.totalorder %s186, %s202
      %p204 = scmp.eq.s32.totalorder %s17, 0
      %p205 = por %p203, %p204
      %p206 = scmp.le.s32.totalorder 1, %s11
      %p207 = scmp.lt.s32.totalorder %s11, 9
      %p208 = pnand %p206, %p207
      %p209 = pneg %p208
      // Predicated region
      $region9: #{mm_projector.1} parent=5 // pred_check
        _
      $region10: #{mm_projector.1} parent=5 // pred_check_branch
        %211 = sbr.rel (%p208) target = $region12
      $region11: #{mm_projector.1} parent=5 // pred_region
        %s212 = ssub.s32 %s11, 1
      $region12: #{mm_projector.1} parent=5 // pred_fallthru
        _
      %p213 = scmp.lt.s32.totalorder %s11, 8
      // Predicated region
      $region13: #{mm_projector.1} parent=5 // pred_check
        %p214 = pneg %p213
      $region14: #{mm_projector.1} parent=5 // pred_check_branch
        %216 = sbr.rel (%p214) target = $region16
      $region15: #{mm_projector.1} parent=5 // pred_region
        // Predicated region
        $region17: #{mm_projector.1} parent=15 // pred_check
          %p217 = pneg %p50
        $region18: #{mm_projector.1} parent=15 // pred_check_branch
          %219 = sbr.rel (%p217) target = $region20
        $region19: #{mm_projector.1} parent=15 // pred_region
          %s220 = smul.u32 16, %s18
          %p221 = scmp.lt.s32.totalorder %s220, 31
          %s222 = scalar_select %p221, %s220, 31
          %s223 = smul.addr %s222, 2
          %s224 = smul.addr %s223, 8
          %s225 = scalar_lea.vmem %s0, %s224
          %s226 = smul.u32 16, %s18
        $region20: #{mm_projector.1} parent=15 // pred_fallthru
          _
        // Predicated region
        $region21: #{mm_projector.1} parent=15 // pred_check
          %p227 = pneg %p80
        $region22: #{mm_projector.1} parent=15 // pred_check_branch
          %229 = sbr.rel (%p227) target = $region24
        $region23: #{mm_projector.1} parent=15 // pred_region
          %s230 = sand.u32 %s70, 1
          %s231 = sand.u32 %s70, 1
          %s232 = smul.addr %s231, 512
          %s233 = scalar_lea.vmem [#allocation4], %s232
          %p234 = scmp.eq.s32.totalorder %s19, 0
          %s235 = scalar_select %p234, %s20, 1
          %s236 = smul.u32 2, %s235
          %s237 = smul.addr %s236, 8
          %s238 = scalar_lea.vmem %s1, %s237
          // Predicated region
          $region25: #{mm_projector.1} parent=23 // pred_check
            _
          $region26: #{mm_projector.1} parent=23 // pred_check_branch
            %240 = sbr.rel (0) target = $region28
          $region27: #{mm_projector.1} parent=23 // pred_region
            // Predicated region
            $region29: #{mm_projector.1} parent=27 // pred_check
              _
            $region30: #{mm_projector.1} parent=27 // pred_check_branch
              %242 = sbr.rel (0) target = $region32
            $region31: #{mm_projector.1} parent=27 // pred_region
              loop: start=0, step=1, limit=1
              $region33: #{mm_projector.1} parent=31 // loop_pre_header
                _
              $region34: #{mm_projector.1} parent=31 // loop_header
                %s244 = sphi 0, %s248
                %p245 = scmp.ge.s32.totalorder %s244, 1
                %s249 = sphi %s238, %s238
                %s250 = sphi %s233, %s233
              $region35: #{mm_projector.1} parent=31 // loop_header_branch
                %247 = sbr.rel (%p245) target = $region39
              $region36: #{mm_projector.1} parent=31 // loop_body
                %v251 = vld [vmem:[%s249] sm:$0xff]
                %252 = vst [vmem:[%s250] sm:$0xff] %v251
                %v253 = vld [vmem:[%s249 + $0x8] sm:$0xff]
                %254 = vst [vmem:[%s250 + $0x8] sm:$0xff] %v253
                %v255 = vld [vmem:[%s249 + $0x20] sm:$0xff]
                %256 = vst [vmem:[%s250 + $0x10] sm:$0xff] %v255
                %v257 = vld [vmem:[%s249 + $0x28] sm:$0xff]
                %258 = vst [vmem:[%s250 + $0x18] sm:$0xff] %v257
                %v259 = vld [vmem:[%s249 + $0x40] sm:$0xff]
                %260 = vst [vmem:[%s250 + $0x20] sm:$0xff] %v259
                %v261 = vld [vmem:[%s249 + $0x48] sm:$0xff]
                %262 = vst [vmem:[%s250 + $0x28] sm:$0xff] %v261
                %v263 = vld [vmem:[%s249 + $0x60] sm:$0xff]
                %264 = vst [vmem:[%s250 + $0x30] sm:$0xff] %v263
                %v265 = vld [vmem:[%s249 + $0x68] sm:$0xff]
                %266 = vst [vmem:[%s250 + $0x38] sm:$0xff] %v265
                %v267 = vld [vmem:[%s249 + $0x80] sm:$0xff]
                %268 = vst [vmem:[%s250 + $0x40] sm:$0xff] %v267
                %v269 = vld [vmem:[%s249 + $0x88] sm:$0xff]
                %270 = vst [vmem:[%s250 + $0x48] sm:$0xff] %v269
                %v271 = vld [vmem:[%s249 + $0xa0] sm:$0xff]
                %272 = vst [vmem:[%s250 + $0x50] sm:$0xff] %v271
                %v273 = vld [vmem:[%s249 + $0xa8] sm:$0xff]
                %274 = vst [vmem:[%s250 + $0x58] sm:$0xff] %v273
                %v275 = vld [vmem:[%s249 + $0xc0] sm:$0xff]
                %276 = vst [vmem:[%s250 + $0x60] sm:$0xff] %v275
                %v277 = vld [vmem:[%s249 + $0xc8] sm:$0xff]
                %278 = vst [vmem:[%s250 + $0x68] sm:$0xff] %v277
                %v279 = vld [vmem:[%s249 + $0xe0] sm:$0xff]
                %280 = vst [vmem:[%s250 + $0x70] sm:$0xff] %v279
                %v281 = vld [vmem:[%s249 + $0xe8] sm:$0xff]
                %282 = vst [vmem:[%s250 + $0x78] sm:$0xff] %v281
                %v283 = vld [vmem:[%s249 + $0x100] sm:$0xff]
                %284 = vst [vmem:[%s250 + $0x80] sm:$0xff] %v283
                %v285 = vld [vmem:[%s249 + $0x108] sm:$0xff]
                %286 = vst [vmem:[%s250 + $0x88] sm:$0xff] %v285
                %v287 = vld [vmem:[%s249 + $0x120] sm:$0xff]
                %288 = vst [vmem:[%s250 + $0x90] sm:$0xff] %v287
                %v289 = vld [vmem:[%s249 + $0x128] sm:$0xff]
                %290 = vst [vmem:[%s250 + $0x98] sm:$0xff] %v289
                %v291 = vld [vmem:[%s249 + $0x140] sm:$0xff]
                %292 = vst [vmem:[%s250 + $0xa0] sm:$0xff] %v291
                %v293 = vld [vmem:[%s249 + $0x148] sm:$0xff]
                %294 = vst [vmem:[%s250 + $0xa8] sm:$0xff] %v293
                %v295 = vld [vmem:[%s249 + $0x160] sm:$0xff]
                %296 = vst [vmem:[%s250 + $0xb0] sm:$0xff] %v295
                %v297 = vld [vmem:[%s249 + $0x168] sm:$0xff]
                %298 = vst [vmem:[%s250 + $0xb8] sm:$0xff] %v297
                %v299 = vld [vmem:[%s249 + $0x180] sm:$0xff]
                %300 = vst [vmem:[%s250 + $0xc0] sm:$0xff] %v299
                %v301 = vld [vmem:[%s249 + $0x188] sm:$0xff]
                %302 = vst [vmem:[%s250 + $0xc8] sm:$0xff] %v301
                %v303 = vld [vmem:[%s249 + $0x1a0] sm:$0xff]
                %304 = vst [vmem:[%s250 + $0xd0] sm:$0xff] %v303
                %v305 = vld [vmem:[%s249 + $0x1a8] sm:$0xff]
                %306 = vst [vmem:[%s250 + $0xd8] sm:$0xff] %v305
                %v307 = vld [vmem:[%s249 + $0x1c0] sm:$0xff]
                %308 = vst [vmem:[%s250 + $0xe0] sm:$0xff] %v307
                %v309 = vld [vmem:[%s249 + $0x1c8] sm:$0xff]
                %310 = vst [vmem:[%s250 + $0xe8] sm:$0xff] %v309
                %v311 = vld [vmem:[%s249 + $0x1e0] sm:$0xff]
                %312 = vst [vmem:[%s250 + $0xf0] sm:$0xff] %v311
                %v313 = vld [vmem:[%s249 + $0x1e8] sm:$0xff]
                %314 = vst [vmem:[%s250 + $0xf8] sm:$0xff] %v313
                %v315 = vld [vmem:[%s249 + $0x200] sm:$0xff]
                %316 = vst [vmem:[%s250 + $0x100] sm:$0xff] %v315
                %v317 = vld [vmem:[%s249 + $0x208] sm:$0xff]
                %318 = vst [vmem:[%s250 + $0x108] sm:$0xff] %v317
                %v319 = vld [vmem:[%s249 + $0x220] sm:$0xff]
                %320 = vst [vmem:[%s250 + $0x110] sm:$0xff] %v319
                %v321 = vld [vmem:[%s249 + $0x228] sm:$0xff]
                %322 = vst [vmem:[%s250 + $0x118] sm:$0xff] %v321
                %v323 = vld [vmem:[%s249 + $0x240] sm:$0xff]
                %324 = vst [vmem:[%s250 + $0x120] sm:$0xff] %v323
                %v325 = vld [vmem:[%s249 + $0x248] sm:$0xff]
                %326 = vst [vmem:[%s250 + $0x128] sm:$0xff] %v325
                %v327 = vld [vmem:[%s249 + $0x260] sm:$0xff]
                %328 = vst [vmem:[%s250 + $0x130] sm:$0xff] %v327
                %v329 = vld [vmem:[%s249 + $0x268] sm:$0xff]
                %330 = vst [vmem:[%s250 + $0x138] sm:$0xff] %v329
                %v331 = vld [vmem:[%s249 + $0x280] sm:$0xff]
                %332 = vst [vmem:[%s250 + $0x140] sm:$0xff] %v331
                %v333 = vld [vmem:[%s249 + $0x288] sm:$0xff]
                %334 = vst [vmem:[%s250 + $0x148] sm:$0xff] %v333
                %v335 = vld [vmem:[%s249 + $0x2a0] sm:$0xff]
                %336 = vst [vmem:[%s250 + $0x150] sm:$0xff] %v335
                %v337 = vld [vmem:[%s249 + $0x2a8] sm:$0xff]
                %338 = vst [vmem:[%s250 + $0x158] sm:$0xff] %v337
                %v339 = vld [vmem:[%s249 + $0x2c0] sm:$0xff]
                %340 = vst [vmem:[%s250 + $0x160] sm:$0xff] %v339
                %v341 = vld [vmem:[%s249 + $0x2c8] sm:$0xff]
                %342 = vst [vmem:[%s250 + $0x168] sm:$0xff] %v341
                %v343 = vld [vmem:[%s249 + $0x2e0] sm:$0xff]
                %344 = vst [vmem:[%s250 + $0x170] sm:$0xff] %v343
                %v345 = vld [vmem:[%s249 + $0x2e8] sm:$0xff]
                %346 = vst [vmem:[%s250 + $0x178] sm:$0xff] %v345
                %v347 = vld [vmem:[%s249 + $0x300] sm:$0xff]
                %348 = vst [vmem:[%s250 + $0x180] sm:$0xff] %v347
                %v349 = vld [vmem:[%s249 + $0x308] sm:$0xff]
                %350 = vst [vmem:[%s250 + $0x188] sm:$0xff] %v349
                %v351 = vld [vmem:[%s249 + $0x320] sm:$0xff]
                %352 = vst [vmem:[%s250 + $0x190] sm:$0xff] %v351
                %v353 = vld [vmem:[%s249 + $0x328] sm:$0xff]
                %354 = vst [vmem:[%s250 + $0x198] sm:$0xff] %v353
                %v355 = vld [vmem:[%s249 + $0x340] sm:$0xff]
                %356 = vst [vmem:[%s250 + $0x1a0] sm:$0xff] %v355
                %v357 = vld [vmem:[%s249 + $0x348] sm:$0xff]
                %358 = vst [vmem:[%s250 + $0x1a8] sm:$0xff] %v357
                %v359 = vld [vmem:[%s249 + $0x360] sm:$0xff]
                %360 = vst [vmem:[%s250 + $0x1b0] sm:$0xff] %v359
                %v361 = vld [vmem:[%s249 + $0x368] sm:$0xff]
                %362 = vst [vmem:[%s250 + $0x1b8] sm:$0xff] %v361
                %v363 = vld [vmem:[%s249 + $0x380] sm:$0xff]
                %364 = vst [vmem:[%s250 + $0x1c0] sm:$0xff] %v363
                %v365 = vld [vmem:[%s249 + $0x388] sm:$0xff]
                %366 = vst [vmem:[%s250 + $0x1c8] sm:$0xff] %v365
                %v367 = vld [vmem:[%s249 + $0x3a0] sm:$0xff]
                %368 = vst [vmem:[%s250 + $0x1d0] sm:$0xff] %v367
                %v369 = vld [vmem:[%s249 + $0x3a8] sm:$0xff]
                %370 = vst [vmem:[%s250 + $0x1d8] sm:$0xff] %v369
                %v371 = vld [vmem:[%s249 + $0x3c0] sm:$0xff]
                %372 = vst [vmem:[%s250 + $0x1e0] sm:$0xff] %v371
                %v373 = vld [vmem:[%s249 + $0x3c8] sm:$0xff]
                %374 = vst [vmem:[%s250 + $0x1e8] sm:$0xff] %v373
                %v375 = vld [vmem:[%s249 + $0x3e0] sm:$0xff]
                %376 = vst [vmem:[%s250 + $0x1f0] sm:$0xff] %v375
                %v377 = vld [vmem:[%s249 + $0x3e8] sm:$0xff]
                %378 = vst [vmem:[%s250 + $0x1f8] sm:$0xff] %v377
              $region37: #{mm_projector.1} parent=31 // loop_footer
                %s248 = sadd.s32 1, %s244
              $region38: #{mm_projector.1} parent=31 // loop_footer_branch
                %243 = sbr.rel target = $region34
              $region39: #{mm_projector.1} parent=31 // loop_exit
                _
            $region32: #{mm_projector.1} parent=27 // pred_fallthru
              _
            // Predicated region
            $region40: #{mm_projector.1} parent=27 // pred_check
              _
            $region41: #{mm_projector.1} parent=27 // pred_check_branch
              %380 = sbr.rel target = $region43
            $region42: #{mm_projector.1} parent=27 // pred_region
              _
            $region43: #{mm_projector.1} parent=27 // pred_fallthru
              _
          $region28: #{mm_projector.1} parent=23 // pred_fallthru
            _
          %381 = vnop
        $region24: #{mm_projector.1} parent=15 // pred_fallthru
          _
        // Predicated region
        $region44: #{mm_projector.1} parent=15 // pred_check
          %p382 = pneg %p110
        $region45: #{mm_projector.1} parent=15 // pred_check_branch
          %384 = sbr.rel (%p382) target = $region47
        $region46: #{mm_projector.1} parent=15 // pred_region
          %p385 = scmp.eq.s32.totalorder %s19, 0
          %s386 = scalar_select %p385, %s20, 1
          %s387 = smul.u32 2, %s386
          %p388 = scmp.lt.s32.totalorder %s387, 3
          %s389 = scalar_select %p388, %s387, 3
          %s390 = scalar_lea.vmem %s2, %s389
          %p391 = scmp.eq.s32.totalorder %s19, 0
          %s392 = scalar_select %p391, %s20, 1
          %s393 = smul.u32 2, %s392
        $region47: #{mm_projector.1} parent=15 // pred_fallthru
          _
        // Predicated region
        $region48: #{mm_projector.1} parent=15 // pred_check
          %p394 = pneg %p138
        $region49: #{mm_projector.1} parent=15 // pred_check_branch
          %396 = sbr.rel (%p394) target = $region51
        $region50: #{mm_projector.1} parent=15 // pred_region
          %s397 = sand.u32 %s128, 1
          %s398 = sand.u32 %s128, 1
          %s399 = smul.addr %s398, 512
          %s400 = scalar_lea.vmem [#allocation5], %s399
          %s401 = smul.u32 32, %s20
          %s402 = smul.u32 2, %s19
          %s403 = smul.addr %s401, 4
          %s404 = sadd.s32 %s402, %s403
          %s405 = smul.addr %s404, 8
          %s406 = scalar_lea.vmem %s3, %s405
          // Predicated region
          $region52: #{mm_projector.1} parent=50 // pred_check
            _
          $region53: #{mm_projector.1} parent=50 // pred_check_branch
            %408 = sbr.rel (0) target = $region55
          $region54: #{mm_projector.1} parent=50 // pred_region
            // Predicated region
            $region56: #{mm_projector.1} parent=54 // pred_check
              _
            $region57: #{mm_projector.1} parent=54 // pred_check_branch
              %410 = sbr.rel (0) target = $region59
            $region58: #{mm_projector.1} parent=54 // pred_region
              loop: start=0, step=1, limit=1
              $region60: #{mm_projector.1} parent=58 // loop_pre_header
                _
              $region61: #{mm_projector.1} parent=58 // loop_header
                %s412 = sphi 0, %s416
                %p413 = scmp.ge.s32.totalorder %s412, 1
                %s417 = sphi %s406, %s406
                %s418 = sphi %s400, %s400
              $region62: #{mm_projector.1} parent=58 // loop_header_branch
                %415 = sbr.rel (%p413) target = $region66
              $region63: #{mm_projector.1} parent=58 // loop_body
                %v419 = vld [vmem:[%s417] sm:$0xff]
                %420 = vst [vmem:[%s418] sm:$0xff] %v419
                %v421 = vld [vmem:[%s417 + $0x8] sm:$0xff]
                %422 = vst [vmem:[%s418 + $0x8] sm:$0xff] %v421
                %v423 = vld [vmem:[%s417 + $0x20] sm:$0xff]
                %424 = vst [vmem:[%s418 + $0x10] sm:$0xff] %v423
                %v425 = vld [vmem:[%s417 + $0x28] sm:$0xff]
                %426 = vst [vmem:[%s418 + $0x18] sm:$0xff] %v425
                %v427 = vld [vmem:[%s417 + $0x40] sm:$0xff]
                %428 = vst [vmem:[%s418 + $0x20] sm:$0xff] %v427
                %v429 = vld [vmem:[%s417 + $0x48] sm:$0xff]
                %430 = vst [vmem:[%s418 + $0x28] sm:$0xff] %v429
                %v431 = vld [vmem:[%s417 + $0x60] sm:$0xff]
                %432 = vst [vmem:[%s418 + $0x30] sm:$0xff] %v431
                %v433 = vld [vmem:[%s417 + $0x68] sm:$0xff]
                %434 = vst [vmem:[%s418 + $0x38] sm:$0xff] %v433
                %v435 = vld [vmem:[%s417 + $0x80] sm:$0xff]
                %436 = vst [vmem:[%s418 + $0x40] sm:$0xff] %v435
                %v437 = vld [vmem:[%s417 + $0x88] sm:$0xff]
                %438 = vst [vmem:[%s418 + $0x48] sm:$0xff] %v437
                %v439 = vld [vmem:[%s417 + $0xa0] sm:$0xff]
                %440 = vst [vmem:[%s418 + $0x50] sm:$0xff] %v439
                %v441 = vld [vmem:[%s417 + $0xa8] sm:$0xff]
                %442 = vst [vmem:[%s418 + $0x58] sm:$0xff] %v441
                %v443 = vld [vmem:[%s417 + $0xc0] sm:$0xff]
                %444 = vst [vmem:[%s418 + $0x60] sm:$0xff] %v443
                %v445 = vld [vmem:[%s417 + $0xc8] sm:$0xff]
                %446 = vst [vmem:[%s418 + $0x68] sm:$0xff] %v445
                %v447 = vld [vmem:[%s417 + $0xe0] sm:$0xff]
                %448 = vst [vmem:[%s418 + $0x70] sm:$0xff] %v447
                %v449 = vld [vmem:[%s417 + $0xe8] sm:$0xff]
                %450 = vst [vmem:[%s418 + $0x78] sm:$0xff] %v449
                %v451 = vld [vmem:[%s417 + $0x100] sm:$0xff]
                %452 = vst [vmem:[%s418 + $0x80] sm:$0xff] %v451
                %v453 = vld [vmem:[%s417 + $0x108] sm:$0xff]
                %454 = vst [vmem:[%s418 + $0x88] sm:$0xff] %v453
                %v455 = vld [vmem:[%s417 + $0x120] sm:$0xff]
                %456 = vst [vmem:[%s418 + $0x90] sm:$0xff] %v455
                %v457 = vld [vmem:[%s417 + $0x128] sm:$0xff]
                %458 = vst [vmem:[%s418 + $0x98] sm:$0xff] %v457
                %v459 = vld [vmem:[%s417 + $0x140] sm:$0xff]
                %460 = vst [vmem:[%s418 + $0xa0] sm:$0xff] %v459
                %v461 = vld [vmem:[%s417 + $0x148] sm:$0xff]
                %462 = vst [vmem:[%s418 + $0xa8] sm:$0xff] %v461
                %v463 = vld [vmem:[%s417 + $0x160] sm:$0xff]
                %464 = vst [vmem:[%s418 + $0xb0] sm:$0xff] %v463
                %v465 = vld [vmem:[%s417 + $0x168] sm:$0xff]
                %466 = vst [vmem:[%s418 + $0xb8] sm:$0xff] %v465
                %v467 = vld [vmem:[%s417 + $0x180] sm:$0xff]
                %468 = vst [vmem:[%s418 + $0xc0] sm:$0xff] %v467
                %v469 = vld [vmem:[%s417 + $0x188] sm:$0xff]
                %470 = vst [vmem:[%s418 + $0xc8] sm:$0xff] %v469
                %v471 = vld [vmem:[%s417 + $0x1a0] sm:$0xff]
                %472 = vst [vmem:[%s418 + $0xd0] sm:$0xff] %v471
                %v473 = vld [vmem:[%s417 + $0x1a8] sm:$0xff]
                %474 = vst [vmem:[%s418 + $0xd8] sm:$0xff] %v473
                %v475 = vld [vmem:[%s417 + $0x1c0] sm:$0xff]
                %476 = vst [vmem:[%s418 + $0xe0] sm:$0xff] %v475
                %v477 = vld [vmem:[%s417 + $0x1c8] sm:$0xff]
                %478 = vst [vmem:[%s418 + $0xe8] sm:$0xff] %v477
                %v479 = vld [vmem:[%s417 + $0x1e0] sm:$0xff]
                %480 = vst [vmem:[%s418 + $0xf0] sm:$0xff] %v479
                %v481 = vld [vmem:[%s417 + $0x1e8] sm:$0xff]
                %482 = vst [vmem:[%s418 + $0xf8] sm:$0xff] %v481
                %v483 = vld [vmem:[%s417 + $0x200] sm:$0xff]
                %484 = vst [vmem:[%s418 + $0x100] sm:$0xff] %v483
                %v485 = vld [vmem:[%s417 + $0x208] sm:$0xff]
                %486 = vst [vmem:[%s418 + $0x108] sm:$0xff] %v485
                %v487 = vld [vmem:[%s417 + $0x220] sm:$0xff]
                %488 = vst [vmem:[%s418 + $0x110] sm:$0xff] %v487
                %v489 = vld [vmem:[%s417 + $0x228] sm:$0xff]
                %490 = vst [vmem:[%s418 + $0x118] sm:$0xff] %v489
                %v491 = vld [vmem:[%s417 + $0x240] sm:$0xff]
                %492 = vst [vmem:[%s418 + $0x120] sm:$0xff] %v491
                %v493 = vld [vmem:[%s417 + $0x248] sm:$0xff]
                %494 = vst [vmem:[%s418 + $0x128] sm:$0xff] %v493
                %v495 = vld [vmem:[%s417 + $0x260] sm:$0xff]
                %496 = vst [vmem:[%s418 + $0x130] sm:$0xff] %v495
                %v497 = vld [vmem:[%s417 + $0x268] sm:$0xff]
                %498 = vst [vmem:[%s418 + $0x138] sm:$0xff] %v497
                %v499 = vld [vmem:[%s417 + $0x280] sm:$0xff]
                %500 = vst [vmem:[%s418 + $0x140] sm:$0xff] %v499
                %v501 = vld [vmem:[%s417 + $0x288] sm:$0xff]
                %502 = vst [vmem:[%s418 + $0x148] sm:$0xff] %v501
                %v503 = vld [vmem:[%s417 + $0x2a0] sm:$0xff]
                %504 = vst [vmem:[%s418 + $0x150] sm:$0xff] %v503
                %v505 = vld [vmem:[%s417 + $0x2a8] sm:$0xff]
                %506 = vst [vmem:[%s418 + $0x158] sm:$0xff] %v505
                %v507 = vld [vmem:[%s417 + $0x2c0] sm:$0xff]
                %508 = vst [vmem:[%s418 + $0x160] sm:$0xff] %v507
                %v509 = vld [vmem:[%s417 + $0x2c8] sm:$0xff]
                %510 = vst [vmem:[%s418 + $0x168] sm:$0xff] %v509
                %v511 = vld [vmem:[%s417 + $0x2e0] sm:$0xff]
                %512 = vst [vmem:[%s418 + $0x170] sm:$0xff] %v511
                %v513 = vld [vmem:[%s417 + $0x2e8] sm:$0xff]
                %514 = vst [vmem:[%s418 + $0x178] sm:$0xff] %v513
                %v515 = vld [vmem:[%s417 + $0x300] sm:$0xff]
                %516 = vst [vmem:[%s418 + $0x180] sm:$0xff] %v515
                %v517 = vld [vmem:[%s417 + $0x308] sm:$0xff]
                %518 = vst [vmem:[%s418 + $0x188] sm:$0xff] %v517
                %v519 = vld [vmem:[%s417 + $0x320] sm:$0xff]
                %520 = vst [vmem:[%s418 + $0x190] sm:$0xff] %v519
                %v521 = vld [vmem:[%s417 + $0x328] sm:$0xff]
                %522 = vst [vmem:[%s418 + $0x198] sm:$0xff] %v521
                %v523 = vld [vmem:[%s417 + $0x340] sm:$0xff]
                %524 = vst [vmem:[%s418 + $0x1a0] sm:$0xff] %v523
                %v525 = vld [vmem:[%s417 + $0x348] sm:$0xff]
                %526 = vst [vmem:[%s418 + $0x1a8] sm:$0xff] %v525
                %v527 = vld [vmem:[%s417 + $0x360] sm:$0xff]
                %528 = vst [vmem:[%s418 + $0x1b0] sm:$0xff] %v527
                %v529 = vld [vmem:[%s417 + $0x368] sm:$0xff]
                %530 = vst [vmem:[%s418 + $0x1b8] sm:$0xff] %v529
                %v531 = vld [vmem:[%s417 + $0x380] sm:$0xff]
                %532 = vst [vmem:[%s418 + $0x1c0] sm:$0xff] %v531
                %v533 = vld [vmem:[%s417 + $0x388] sm:$0xff]
                %534 = vst [vmem:[%s418 + $0x1c8] sm:$0xff] %v533
                %v535 = vld [vmem:[%s417 + $0x3a0] sm:$0xff]
                %536 = vst [vmem:[%s418 + $0x1d0] sm:$0xff] %v535
                %v537 = vld [vmem:[%s417 + $0x3a8] sm:$0xff]
                %538 = vst [vmem:[%s418 + $0x1d8] sm:$0xff] %v537
                %v539 = vld [vmem:[%s417 + $0x3c0] sm:$0xff]
                %540 = vst [vmem:[%s418 + $0x1e0] sm:$0xff] %v539
                %v541 = vld [vmem:[%s417 + $0x3c8] sm:$0xff]
                %542 = vst [vmem:[%s418 + $0x1e8] sm:$0xff] %v541
                %v543 = vld [vmem:[%s417 + $0x3e0] sm:$0xff]
                %544 = vst [vmem:[%s418 + $0x1f0] sm:$0xff] %v543
                %v545 = vld [vmem:[%s417 + $0x3e8] sm:$0xff]
                %546 = vst [vmem:[%s418 + $0x1f8] sm:$0xff] %v545
              $region64: #{mm_projector.1} parent=58 // loop_footer
                %s416 = sadd.s32 1, %s412
              $region65: #{mm_projector.1} parent=58 // loop_footer_branch
                %411 = sbr.rel target = $region61
              $region66: #{mm_projector.1} parent=58 // loop_exit
                _
            $region59: #{mm_projector.1} parent=54 // pred_fallthru
              _
            // Predicated region
            $region67: #{mm_projector.1} parent=54 // pred_check
              _
            $region68: #{mm_projector.1} parent=54 // pred_check_branch
              %548 = sbr.rel target = $region70
            $region69: #{mm_projector.1} parent=54 // pred_region
              _
            $region70: #{mm_projector.1} parent=54 // pred_fallthru
              _
          $region55: #{mm_projector.1} parent=50 // pred_fallthru
            _
          %549 = vnop
        $region51: #{mm_projector.1} parent=15 // pred_fallthru
          _
        // Predicated region
        $region71: #{mm_projector.1} parent=15 // pred_check
          %p550 = pneg %p164
        $region72: #{mm_projector.1} parent=15 // pred_check_branch
          %552 = sbr.rel (%p550) target = $region74
        $region73: #{mm_projector.1} parent=15 // pred_region
          %s553 = smul.u32 2, %s19
          %p554 = scmp.lt.s32.totalorder %s553, 3
          %s555 = scalar_select %p554, %s553, 3
          %s556 = scalar_lea.vmem %s4, %s555
          %s557 = smul.u32 2, %s19
        $region74: #{mm_projector.1} parent=15 // pred_fallthru
          _
      $region16: #{mm_projector.1} parent=5 // pred_fallthru
        _
      %p558 = scmp.le.s32.totalorder 1, %s11
      %p559 = scmp.lt.s32.totalorder %s11, 9
      %p560 = pnand %p558, %p559
      %p561 = pneg %p560
      // Predicated region
      $region75: #{mm_projector.1} parent=5 // pred_check
        _
      $region76: #{mm_projector.1} parent=5 // pred_check_branch
        %563 = sbr.rel (%p560) target = $region78
      $region77: #{mm_projector.1} parent=5 // pred_region
        %s564 = ssub.s32 %s11, 1
        %s565 = sand.u32 %s73, 1
        %s566 = sand.u32 %s73, 1
        %s567 = smul.addr %s566, 512
        %s568 = scalar_lea.vmem [#allocation4], %s567
        // Predicated region
        $region79: #{mm_projector.1} parent=77 // pred_check
          %p569 = pneg %p86
        $region80: #{mm_projector.1} parent=77 // pred_check_branch
          %571 = sbr.rel (%p569) target = $region82
        $region81: #{mm_projector.1} parent=77 // pred_region
          _
        $region82: #{mm_projector.1} parent=77 // pred_fallthru
          _
        %s572 = sand.u32 %s131, 1
        %s573 = sand.u32 %s131, 1
        %s574 = smul.addr %s573, 512
        %s575 = scalar_lea.vmem [#allocation5], %s574
        // Predicated region
        $region83: #{mm_projector.1} parent=77 // pred_check
          %p576 = pneg %p144
        $region84: #{mm_projector.1} parent=77 // pred_check_branch
          %578 = sbr.rel (%p576) target = $region86
        $region85: #{mm_projector.1} parent=77 // pred_region
          _
        $region86: #{mm_projector.1} parent=77 // pred_fallthru
          _
        %s579 = smul.u32 16, %s21
        %p580 = scmp.lt.s32.totalorder %s579, 31
        %s581 = scalar_select %p580, %s579, 31
        %s582 = smul.addr %s581, 2
        %s583 = smul.addr %s582, 8
        %s584 = scalar_lea.vmem %s0, %s583
        %p585 = pneg %p56
        %p586 = pneg %p53
        %s587 = sand.u32 %s73, 1
        %s588 = sand.u32 %s73, 1
        %s589 = smul.addr %s588, 512
        %s590 = scalar_lea.vmem [#allocation4], %s589
        %p591 = pneg %p86
        %p592 = pneg %p83
        %p593 = scmp.eq.s32.totalorder %s22, 0
        %s594 = scalar_select %p593, %s23, 1
        %s595 = smul.u32 2, %s594
        %p596 = scmp.lt.s32.totalorder %s595, 3
        %s597 = scalar_select %p596, %s595, 3
        %s598 = scalar_lea.vmem %s2, %s597
        %p599 = pneg %p116
        %p600 = pneg %p113
        %s601 = sand.u32 %s131, 1
        %s602 = sand.u32 %s131, 1
        %s603 = smul.addr %s602, 512
        %s604 = scalar_lea.vmem [#allocation5], %s603
        %p605 = pneg %p144
        %p606 = pneg %p141
        %s607 = smul.u32 2, %s22
        %p608 = scmp.lt.s32.totalorder %s607, 3
        %s609 = scalar_select %p608, %s607, 3
        %s610 = scalar_lea.vmem %s4, %s609
        %p611 = pneg %p170
        %p612 = pneg %p167
        %p613 = pneg %p198
        %p614 = pneg %p195
        %s615 = sand.u32 %s185, 1
        %s616 = sand.u32 %s185, 1
        %s617 = smul.addr %s616, 256
        %s618 = scalar_lea.vmem [#allocation6], %s617
        %s619 = smul.u32 16, %s21
        %p620 = scmp.lt.s32.totalorder %s619, 31
        %s621 = scalar_select %p620, %s619, 31
        %s622 = smul.addr %s621, 2
        %s623 = smul.addr %s622, 8
        %s624 = scalar_lea.vmem %s0, %s623
        %s625 = smul.u32 16, %s21
        %p626 = scmp.eq.s32.totalorder %s22, 0
        %s627 = scalar_select %p626, %s23, 1
        %s628 = smul.u32 2, %s627
        %p629 = scmp.eq.s32.totalorder %s22, 0
        %s630 = scalar_select %p629, %s23, 1
        %s631 = smul.u32 2, %s630
        %p632 = scmp.lt.s32.totalorder %s631, 3
        %s633 = scalar_select %p632, %s631, 3
        %s634 = scalar_lea.vmem %s2, %s633
        %p635 = scmp.eq.s32.totalorder %s22, 0
        %s636 = scalar_select %p635, %s23, 1
        %s637 = smul.u32 2, %s636
        %s638 = smul.u32 32, %s23
        %s639 = smul.u32 2, %s22
        %s640 = smul.u32 2, %s22
        %p641 = scmp.lt.s32.totalorder %s640, 3
        %s642 = scalar_select %p641, %s640, 3
        %s643 = scalar_lea.vmem %s4, %s642
        %s644 = smul.u32 2, %s22
        %s645 = smul.u32 16, %s21
        %s646 = smul.u32 2, %s22
        %p647 = scmp.eq.s32.totalorder %s23, 0
        // Predicated region
        $region87: #{mm_projector.1} parent=77 // pred_check
          %p648 = pneg %p647
        $region88: #{mm_projector.1} parent=77 // pred_check_branch
          %650 = sbr.rel (%p648) target = $region90
        $region89: #{mm_projector.1} parent=77 // pred_region
          %651 = vst [vmem:[#allocation2] sm:$0xff] 0.0
          %652 = vst [vmem:[#allocation2 + $0x8] sm:$0xff] 0.0
          %653 = vst [vmem:[#allocation2 + $0x10] sm:$0xff] 0.0
          %654 = vst [vmem:[#allocation2 + $0x18] sm:$0xff] 0.0
          %655 = vst [vmem:[#allocation2 + $0x20] sm:$0xff] 0.0
          %656 = vst [vmem:[#allocation2 + $0x28] sm:$0xff] 0.0
          %657 = vst [vmem:[#allocation2 + $0x30] sm:$0xff] 0.0
          %658 = vst [vmem:[#allocation2 + $0x38] sm:$0xff] 0.0
          %659 = vst [vmem:[#allocation2 + $0x40] sm:$0xff] 0.0
          %660 = vst [vmem:[#allocation2 + $0x48] sm:$0xff] 0.0
          %661 = vst [vmem:[#allocation2 + $0x50] sm:$0xff] 0.0
          %662 = vst [vmem:[#allocation2 + $0x58] sm:$0xff] 0.0
          %663 = vst [vmem:[#allocation2 + $0x60] sm:$0xff] 0.0
          %664 = vst [vmem:[#allocation2 + $0x68] sm:$0xff] 0.0
          %665 = vst [vmem:[#allocation2 + $0x70] sm:$0xff] 0.0
          %666 = vst [vmem:[#allocation2 + $0x78] sm:$0xff] 0.0
          %667 = vst [vmem:[#allocation2 + $0x80] sm:$0xff] 0.0
          %668 = vst [vmem:[#allocation2 + $0x88] sm:$0xff] 0.0
          %669 = vst [vmem:[#allocation2 + $0x90] sm:$0xff] 0.0
          %670 = vst [vmem:[#allocation2 + $0x98] sm:$0xff] 0.0
          %671 = vst [vmem:[#allocation2 + $0xa0] sm:$0xff] 0.0
          %672 = vst [vmem:[#allocation2 + $0xa8] sm:$0xff] 0.0
          %673 = vst [vmem:[#allocation2 + $0xb0] sm:$0xff] 0.0
          %674 = vst [vmem:[#allocation2 + $0xb8] sm:$0xff] 0.0
          %675 = vst [vmem:[#allocation2 + $0xc0] sm:$0xff] 0.0
          %676 = vst [vmem:[#allocation2 + $0xc8] sm:$0xff] 0.0
          %677 = vst [vmem:[#allocation2 + $0xd0] sm:$0xff] 0.0
          %678 = vst [vmem:[#allocation2 + $0xd8] sm:$0xff] 0.0
          %679 = vst [vmem:[#allocation2 + $0xe0] sm:$0xff] 0.0
          %680 = vst [vmem:[#allocation2 + $0xe8] sm:$0xff] 0.0
          %681 = vst [vmem:[#allocation2 + $0xf0] sm:$0xff] 0.0
          %682 = vst [vmem:[#allocation2 + $0xf8] sm:$0xff] 0.0
        $region90: #{mm_projector.1} parent=77 // pred_fallthru
          _
        %p683 = scmp.eq.s32.totalorder %s22, 0
        // Predicated region
        $region91: #{mm_projector.1} parent=77 // pred_check
          %p684 = pneg %p683
        $region92: #{mm_projector.1} parent=77 // pred_check_branch
          %686 = sbr.rel (%p684) target = $region94
        $region93: #{mm_projector.1} parent=77 // pred_region
          %v687 = vld [vmem:[%s624] sm:$0xff]
          %v688 = vld [vmem:[%s624 + $0x8] sm:$0xff]
          %v689 = vld [vmem:[%s624 + $0x10] sm:$0xff]
          %v690 = vld [vmem:[%s624 + $0x18] sm:$0xff]
          %v691 = vld [vmem:[%s624 + $0x20] sm:$0xff]
          %v692 = vld [vmem:[%s624 + $0x28] sm:$0xff]
          %v693 = vld [vmem:[%s624 + $0x30] sm:$0xff]
          %v694 = vld [vmem:[%s624 + $0x38] sm:$0xff]
          %v695 = vld [vmem:[%s624 + $0x40] sm:$0xff]
          %v696 = vld [vmem:[%s624 + $0x48] sm:$0xff]
          %v697 = vld [vmem:[%s624 + $0x50] sm:$0xff]
          %v698 = vld [vmem:[%s624 + $0x58] sm:$0xff]
          %v699 = vld [vmem:[%s624 + $0x60] sm:$0xff]
          %v700 = vld [vmem:[%s624 + $0x68] sm:$0xff]
          %v701 = vld [vmem:[%s624 + $0x70] sm:$0xff]
          %v702 = vld [vmem:[%s624 + $0x78] sm:$0xff]
          %v703 = vld [vmem:[%s624 + $0x80] sm:$0xff]
          %v704 = vld [vmem:[%s624 + $0x88] sm:$0xff]
          %v705 = vld [vmem:[%s624 + $0x90] sm:$0xff]
          %v706 = vld [vmem:[%s624 + $0x98] sm:$0xff]
          %v707 = vld [vmem:[%s624 + $0xa0] sm:$0xff]
          %v708 = vld [vmem:[%s624 + $0xa8] sm:$0xff]
          %v709 = vld [vmem:[%s624 + $0xb0] sm:$0xff]
          %v710 = vld [vmem:[%s624 + $0xb8] sm:$0xff]
          %v711 = vld [vmem:[%s624 + $0xc0] sm:$0xff]
          %v712 = vld [vmem:[%s624 + $0xc8] sm:$0xff]
          %v713 = vld [vmem:[%s624 + $0xd0] sm:$0xff]
          %v714 = vld [vmem:[%s624 + $0xd8] sm:$0xff]
          %v715 = vld [vmem:[%s624 + $0xe0] sm:$0xff]
          %v716 = vld [vmem:[%s624 + $0xe8] sm:$0xff]
          %v717 = vld [vmem:[%s624 + $0xf0] sm:$0xff]
          %v718 = vld [vmem:[%s624 + $0xf8] sm:$0xff]
          %v719 = vld [vmem:[%s568] sm:$0xff]
          %v720 = vld [vmem:[%s568 + $0x8] sm:$0xff]
          %v721 = vld [vmem:[%s568 + $0x10] sm:$0xff]
          %v722 = vld [vmem:[%s568 + $0x18] sm:$0xff]
          %v723 = vld [vmem:[%s568 + $0x20] sm:$0xff]
          %v724 = vld [vmem:[%s568 + $0x28] sm:$0xff]
          %v725 = vld [vmem:[%s568 + $0x30] sm:$0xff]
          %v726 = vld [vmem:[%s568 + $0x38] sm:$0xff]
          %v727 = vld [vmem:[%s568 + $0x40] sm:$0xff]
          %v728 = vld [vmem:[%s568 + $0x48] sm:$0xff]
          %v729 = vld [vmem:[%s568 + $0x50] sm:$0xff]
          %v730 = vld [vmem:[%s568 + $0x58] sm:$0xff]
          %v731 = vld [vmem:[%s568 + $0x60] sm:$0xff]
          %v732 = vld [vmem:[%s568 + $0x68] sm:$0xff]
          %v733 = vld [vmem:[%s568 + $0x70] sm:$0xff]
          %v734 = vld [vmem:[%s568 + $0x78] sm:$0xff]
          %v735 = vld [vmem:[%s568 + $0x80] sm:$0xff]
          %v736 = vld [vmem:[%s568 + $0x88] sm:$0xff]
          %v737 = vld [vmem:[%s568 + $0x90] sm:$0xff]
          %v738 = vld [vmem:[%s568 + $0x98] sm:$0xff]
          %v739 = vld [vmem:[%s568 + $0xa0] sm:$0xff]
          %v740 = vld [vmem:[%s568 + $0xa8] sm:$0xff]
          %v741 = vld [vmem:[%s568 + $0xb0] sm:$0xff]
          %v742 = vld [vmem:[%s568 + $0xb8] sm:$0xff]
          %v743 = vld [vmem:[%s568 + $0xc0] sm:$0xff]
          %v744 = vld [vmem:[%s568 + $0xc8] sm:$0xff]
          %v745 = vld [vmem:[%s568 + $0xd0] sm:$0xff]
          %v746 = vld [vmem:[%s568 + $0xd8] sm:$0xff]
          %v747 = vld [vmem:[%s568 + $0xe0] sm:$0xff]
          %v748 = vld [vmem:[%s568 + $0xe8] sm:$0xff]
          %v749 = vld [vmem:[%s568 + $0xf0] sm:$0xff]
          %v750 = vld [vmem:[%s568 + $0xf8] sm:$0xff]
          %v751 = vld [vmem:[%s568 + $0x100] sm:$0xff]
          %v752 = vld [vmem:[%s568 + $0x108] sm:$0xff]
          %v753 = vld [vmem:[%s568 + $0x110] sm:$0xff]
          %v754 = vld [vmem:[%s568 + $0x118] sm:$0xff]
          %v755 = vld [vmem:[%s568 + $0x120] sm:$0xff]
          %v756 = vld [vmem:[%s568 + $0x128] sm:$0xff]
          %v757 = vld [vmem:[%s568 + $0x130] sm:$0xff]
          %v758 = vld [vmem:[%s568 + $0x138] sm:$0xff]
          %v759 = vld [vmem:[%s568 + $0x140] sm:$0xff]
          %v760 = vld [vmem:[%s568 + $0x148] sm:$0xff]
          %v761 = vld [vmem:[%s568 + $0x150] sm:$0xff]
          %v762 = vld [vmem:[%s568 + $0x158] sm:$0xff]
          %v763 = vld [vmem:[%s568 + $0x160] sm:$0xff]
          %v764 = vld [vmem:[%s568 + $0x168] sm:$0xff]
          %v765 = vld [vmem:[%s568 + $0x170] sm:$0xff]
          %v766 = vld [vmem:[%s568 + $0x178] sm:$0xff]
          %v767 = vld [vmem:[%s568 + $0x180] sm:$0xff]
          %v768 = vld [vmem:[%s568 + $0x188] sm:$0xff]
          %v769 = vld [vmem:[%s568 + $0x190] sm:$0xff]
          %v770 = vld [vmem:[%s568 + $0x198] sm:$0xff]
          %v771 = vld [vmem:[%s568 + $0x1a0] sm:$0xff]
          %v772 = vld [vmem:[%s568 + $0x1a8] sm:$0xff]
          %v773 = vld [vmem:[%s568 + $0x1b0] sm:$0xff]
          %v774 = vld [vmem:[%s568 + $0x1b8] sm:$0xff]
          %v775 = vld [vmem:[%s568 + $0x1c0] sm:$0xff]
          %v776 = vld [vmem:[%s568 + $0x1c8] sm:$0xff]
          %v777 = vld [vmem:[%s568 + $0x1d0] sm:$0xff]
          %v778 = vld [vmem:[%s568 + $0x1d8] sm:$0xff]
          %v779 = vld [vmem:[%s568 + $0x1e0] sm:$0xff]
          %v780 = vld [vmem:[%s568 + $0x1e8] sm:$0xff]
          %v781 = vld [vmem:[%s568 + $0x1f0] sm:$0xff]
          %v782 = vld [vmem:[%s568 + $0x1f8] sm:$0xff]
          %v783 = vld [vmem:[%s634] sm:$0x3]
          %v785 = vlaneseq
          %v786 = vshrl.u32 %v785, 7
          %v787 = vsub.s32 0, %v786
          %v788 = vrot.slane %v783, %v787
          %v789 = vlaneseq
          %v790 = vshrl.u32 %v789, 7
          %v791 = vsub.s32 1, %v790
          %v792 = vrot.slane %v783, %v791
          %795 = vmatprep.subr.mxu0 %v720
          %796 = vmatpush1.msra.mxu0 %v719
          %797 = vmatprep.subr.mxu0 %v722
          %798 = vmatpush1.msra.mxu0 %v721
          %799 = vmatprep.subr.mxu0 %v724
          %800 = vmatpush1.msra.mxu0 %v723
          %801 = vmatprep.subr.mxu0 %v726
          %802 = vmatpush1.msra.mxu0 %v725
          %803 = vmatprep.subr.mxu0 %v728
          %804 = vmatpush1.msra.mxu0 %v727
          %805 = vmatprep.subr.mxu0 %v730
          %806 = vmatpush1.msra.mxu0 %v729
          %807 = vmatprep.subr.mxu0 %v732
          %808 = vmatpush1.msra.mxu0 %v731
          %809 = vmatprep.subr.mxu0 %v734
          %810 = vmatpush1.msra.mxu0 %v733
          %811 = vmatprep.subr.mxu0 %v736
          %812 = vmatpush1.msra.mxu0 %v735
          %813 = vmatprep.subr.mxu0 %v738
          %814 = vmatpush1.msra.mxu0 %v737
          %815 = vmatprep.subr.mxu0 %v740
          %816 = vmatpush1.msra.mxu0 %v739
          %817 = vmatprep.subr.mxu0 %v742
          %818 = vmatpush1.msra.mxu0 %v741
          %819 = vmatprep.subr.mxu0 %v744
          %820 = vmatpush1.msra.mxu0 %v743
          %821 = vmatprep.subr.mxu0 %v746
          %822 = vmatpush1.msra.mxu0 %v745
          %823 = vmatprep.subr.mxu0 %v748
          %824 = vmatpush1.msra.mxu0 %v747
          %825 = vmatprep.subr.mxu0 %v750
          %826 = vmatpush1.msra.mxu0 %v749
          %827 = vmatprep.subr.mxu0 %v752
          %828 = vmatpush1.msra.mxu0 %v751
          %829 = vmatprep.subr.mxu0 %v754
          %830 = vmatpush1.msra.mxu0 %v753
          %831 = vmatprep.subr.mxu0 %v756
          %832 = vmatpush1.msra.mxu0 %v755
          %833 = vmatprep.subr.mxu0 %v758
          %834 = vmatpush1.msra.mxu0 %v757
          %835 = vmatprep.subr.mxu0 %v760
          %836 = vmatpush1.msra.mxu0 %v759
          %837 = vmatprep.subr.mxu0 %v762
          %838 = vmatpush1.msra.mxu0 %v761
          %839 = vmatprep.subr.mxu0 %v764
          %840 = vmatpush1.msra.mxu0 %v763
          %841 = vmatprep.subr.mxu0 %v766
          %842 = vmatpush1.msra.mxu0 %v765
          %843 = vmatprep.subr.mxu0 %v768
          %844 = vmatpush1.msra.mxu0 %v767
          %845 = vmatprep.subr.mxu0 %v770
          %846 = vmatpush1.msra.mxu0 %v769
          %847 = vmatprep.subr.mxu0 %v772
          %848 = vmatpush1.msra.mxu0 %v771
          %849 = vmatprep.subr.mxu0 %v774
          %850 = vmatpush1.msra.mxu0 %v773
          %851 = vmatprep.subr.mxu0 %v776
          %852 = vmatpush1.msra.mxu0 %v775
          %853 = vmatprep.subr.mxu0 %v778
          %854 = vmatpush1.msra.mxu0 %v777
          %855 = vmatprep.subr.mxu0 %v780
          %856 = vmatpush1.msra.mxu0 %v779
          %857 = vmatprep.subr.mxu0 %v782
          %858 = vmatpush1.msra.mxu0 %v781
          %859 = vmatprep.mubr.f32.mxu0 %v688
          %860 = vmatmul.mubr.f32.gmra.mrb[0].mxu0 %v687
          %v861 = vpop.f32.mrb[0].mxu0
          %v862 = vadd.f32 %v788, %v861
          %v863 = vpop.f32.mrb[0].mxu0
          %v864 = vadd.f32 %v792, %v863
          %865 = vmatprep.mubr.f32.mxu0 %v690
          %866 = vmatmul.mubr.f32.gmra.mrb[0].mxu0 %v689
          %v867 = vpop.f32.mrb[0].mxu0
          %v868 = vadd.f32 %v788, %v867
          %v869 = vpop.f32.mrb[0].mxu0
          %v870 = vadd.f32 %v792, %v869
          %871 = vmatprep.mubr.f32.mxu0 %v692
          %872 = vmatmul.mubr.f32.gmra.mrb[0].mxu0 %v691
          %v873 = vpop.f32.mrb[0].mxu0
          %v874 = vadd.f32 %v788, %v873
          %v875 = vpop.f32.mrb[0].mxu0
          %v876 = vadd.f32 %v792, %v875
          %877 = vmatprep.mubr.f32.mxu0 %v694
          %878 = vmatmul.mubr.f32.gmra.mrb[0].mxu0 %v693
          %v879 = vpop.f32.mrb[0].mxu0
          %v880 = vadd.f32 %v788, %v879
          %v881 = vpop.f32.mrb[0].mxu0
          %v882 = vadd.f32 %v792, %v881
          %883 = vmatprep.mubr.f32.mxu0 %v696
          %884 = vmatmul.mubr.f32.gmra.mrb[0].mxu0 %v695
          %v885 = vpop.f32.mrb[0].mxu0
          %v886 = vadd.f32 %v788, %v885
          %v887 = vpop.f32.mrb[0].mxu0
          %v888 = vadd.f32 %v792, %v887
          %889 = vmatprep.mubr.f32.mxu0 %v698
          %890 = vmatmul.mubr.f32.gmra.mrb[0].mxu0 %v697
          %v891 = vpop.f32.mrb[0].mxu0
          %v892 = vadd.f32 %v788, %v891
          %v893 = vpop.f32.mrb[0].mxu0
          %v894 = vadd.f32 %v792, %v893
          %895 = vmatprep.mubr.f32.mxu0 %v700
          %896 = vmatmul.mubr.f32.gmra.mrb[0].mxu0 %v699
          %v897 = vpop.f32.mrb[0].mxu0
          %v898 = vadd.f32 %v788, %v897
          %v899 = vpop.f32.mrb[0].mxu0
          %v900 = vadd.f32 %v792, %v899
          %901 = vmatprep.mubr.f32.mxu0 %v702
          %902 = vmatmul.mubr.f32.gmra.mrb[0].mxu0 %v701
          %v903 = vpop.f32.mrb[0].mxu0
          %v904 = vadd.f32 %v788, %v903
          %v905 = vpop.f32.mrb[0].mxu0
          %v906 = vadd.f32 %v792, %v905
          %907 = vmatprep.mubr.f32.mxu0 %v704
          %908 = vmatmul.mubr.f32.gmra.mrb[0].mxu0 %v703
          %v909 = vpop.f32.mrb[0].mxu0
          %v910 = vadd.f32 %v788, %v909
          %v911 = vpop.f32.mrb[0].mxu0
          %v912 = vadd.f32 %v792, %v911
          %913 = vmatprep.mubr.f32.mxu0 %v706
          %914 = vmatmul.mubr.f32.gmra.mrb[0].mxu0 %v705
          %v915 = vpop.f32.mrb[0].mxu0
          %v916 = vadd.f32 %v788, %v915
          %v917 = vpop.f32.mrb[0].mxu0
          %v918 = vadd.f32 %v792, %v917
          %919 = vmatprep.mubr.f32.mxu0 %v708
          %920 = vmatmul.mubr.f32.gmra.mrb[0].mxu0 %v707
          %v921 = vpop.f32.mrb[0].mxu0
          %v922 = vadd.f32 %v788, %v921
          %v923 = vpop.f32.mrb[0].mxu0
          %v924 = vadd.f32 %v792, %v923
          %925 = vmatprep.mubr.f32.mxu0 %v710
          %926 = vmatmul.mubr.f32.gmra.mrb[0].mxu0 %v709
          %v927 = vpop.f32.mrb[0].mxu0
          %v928 = vadd.f32 %v788, %v927
          %v929 = vpop.f32.mrb[0].mxu0
          %v930 = vadd.f32 %v792, %v929
          %931 = vmatprep.mubr.f32.mxu0 %v712
          %932 = vmatmul.mubr.f32.gmra.mrb[0].mxu0 %v711
          %v933 = vpop.f32.mrb[0].mxu0
          %v934 = vadd.f32 %v788, %v933
          %v935 = vpop.f32.mrb[0].mxu0
          %v936 = vadd.f32 %v792, %v935
          %937 = vmatprep.mubr.f32.mxu0 %v714
          %938 = vmatmul.mubr.f32.gmra.mrb[0].mxu0 %v713
          %v939 = vpop.f32.mrb[0].mxu0
          %v940 = vadd.f32 %v788, %v939
          %v941 = vpop.f32.mrb[0].mxu0
          %v942 = vadd.f32 %v792, %v941
          %943 = vmatprep.mubr.f32.mxu0 %v716
          %944 = vmatmul.mubr.f32.gmra.mrb[0].mxu0 %v715
          %v945 = vpop.f32.mrb[0].mxu0
          %v946 = vadd.f32 %v788, %v945
          %v947 = vpop.f32.mrb[0].mxu0
          %v948 = vadd.f32 %v792, %v947
          %949 = vmatprep.mubr.f32.mxu0 %v718
          %950 = vmatmul.mubr.f32.gmra.mrb[0].mxu0 %v717
          %v951 = vpop.f32.mrb[0].mxu0
          %v952 = vadd.f32 %v788, %v951
          %v953 = vpop.f32.mrb[0].mxu0
          %v954 = vadd.f32 %v792, %v953
          %955 = vdwg.mxu0
          %v956 = vmul.f32 %v862, 0.5
          %v957 = vmul.f32 %v864, 0.5
          %v958 = vmul.f32 %v868, 0.5
          %v959 = vmul.f32 %v870, 0.5
          %v960 = vmul.f32 %v874, 0.5
          %v961 = vmul.f32 %v876, 0.5
          %v962 = vmul.f32 %v880, 0.5
          %v963 = vmul.f32 %v882, 0.5
          %v964 = vmul.f32 %v886, 0.5
          %v965 = vmul.f32 %v888, 0.5
          %v966 = vmul.f32 %v892, 0.5
          %v967 = vmul.f32 %v894, 0.5
          %v968 = vmul.f32 %v898, 0.5
          %v969 = vmul.f32 %v900, 0.5
          %v970 = vmul.f32 %v904, 0.5
          %v971 = vmul.f32 %v906, 0.5
          %v972 = vmul.f32 %v910, 0.5
          %v973 = vmul.f32 %v912, 0.5
          %v974 = vmul.f32 %v916, 0.5
          %v975 = vmul.f32 %v918, 0.5
          %v976 = vmul.f32 %v922, 0.5
          %v977 = vmul.f32 %v924, 0.5
          %v978 = vmul.f32 %v928, 0.5
          %v979 = vmul.f32 %v930, 0.5
          %v980 = vmul.f32 %v934, 0.5
          %v981 = vmul.f32 %v936, 0.5
          %v982 = vmul.f32 %v940, 0.5
          %v983 = vmul.f32 %v942, 0.5
          %v984 = vmul.f32 %v946, 0.5
          %v985 = vmul.f32 %v948, 0.5
          %v986 = vmul.f32 %v952, 0.5
          %v987 = vmul.f32 %v954, 0.5
          %v988 = vmul.f32 %v862, 0.70710677
          %v989 = vmul.f32 %v864, 0.70710677
          %v990 = vmul.f32 %v868, 0.70710677
          %v991 = vmul.f32 %v870, 0.70710677
          %v992 = vmul.f32 %v874, 0.70710677
          %v993 = vmul.f32 %v876, 0.70710677
          %v994 = vmul.f32 %v880, 0.70710677
          %v995 = vmul.f32 %v882, 0.70710677
          %v996 = vmul.f32 %v886, 0.70710677
          %v997 = vmul.f32 %v888, 0.70710677
          %v998 = vmul.f32 %v892, 0.70710677
          %v999 = vmul.f32 %v894, 0.70710677
          %v1000 = vmul.f32 %v898, 0.70710677
          %v1001 = vmul.f32 %v900, 0.70710677
          %v1002 = vmul.f32 %v904, 0.70710677
          %v1003 = vmul.f32 %v906, 0.70710677
          %v1004 = vmul.f32 %v910, 0.70710677
          %v1005 = vmul.f32 %v912, 0.70710677
          %v1006 = vmul.f32 %v916, 0.70710677
          %v1007 = vmul.f32 %v918, 0.70710677
          %v1008 = vmul.f32 %v922, 0.70710677
          %v1009 = vmul.f32 %v924, 0.70710677
          %v1010 = vmul.f32 %v928, 0.70710677
          %v1011 = vmul.f32 %v930, 0.70710677
          %v1012 = vmul.f32 %v934, 0.70710677
          %v1013 = vmul.f32 %v936, 0.70710677
          %v1014 = vmul.f32 %v940, 0.70710677
          %v1015 = vmul.f32 %v942, 0.70710677
          %v1016 = vmul.f32 %v946, 0.70710677
          %v1017 = vmul.f32 %v948, 0.70710677
          %v1018 = vmul.f32 %v952, 0.70710677
          %v1019 = vmul.f32 %v954, 0.70710677
          %v1020 = verf.f32.pop %v988
          %v1021 = verf.f32.pop %v989
          %v1022 = verf.f32.pop %v990
          %v1023 = verf.f32.pop %v991
          %v1024 = verf.f32.pop %v992
          %v1025 = verf.f32.pop %v993
          %v1026 = verf.f32.pop %v994
          %v1027 = verf.f32.pop %v995
          %v1028 = verf.f32.pop %v996
          %v1029 = verf.f32.pop %v997
          %v1030 = verf.f32.pop %v998
          %v1031 = verf.f32.pop %v999
          %v1032 = verf.f32.pop %v1000
          %v1033 = verf.f32.pop %v1001
          %v1034 = verf.f32.pop %v1002
          %v1035 = verf.f32.pop %v1003
          %v1036 = verf.f32.pop %v1004
          %v1037 = verf.f32.pop %v1005
          %v1038 = verf.f32.pop %v1006
          %v1039 = verf.f32.pop %v1007
          %v1040 = verf.f32.pop %v1008
          %v1041 = verf.f32.pop %v1009
          %v1042 = verf.f32.pop %v1010
          %v1043 = verf.f32.pop %v1011
          %v1044 = verf.f32.pop %v1012
          %v1045 = verf.f32.pop %v1013
          %v1046 = verf.f32.pop %v1014
          %v1047 = verf.f32.pop %v1015
          %v1048 = verf.f32.pop %v1016
          %v1049 = verf.f32.pop %v1017
          %v1050 = verf.f32.pop %v1018
          %v1051 = verf.f32.pop %v1019
          %v1052 = vadd.f32 %v1020, 1.0
          %v1053 = vadd.f32 %v1021, 1.0
          %v1054 = vadd.f32 %v1022, 1.0
          %v1055 = vadd.f32 %v1023, 1.0
          %v1056 = vadd.f32 %v1024, 1.0
          %v1057 = vadd.f32 %v1025, 1.0
          %v1058 = vadd.f32 %v1026, 1.0
          %v1059 = vadd.f32 %v1027, 1.0
          %v1060 = vadd.f32 %v1028, 1.0
          %v1061 = vadd.f32 %v1029, 1.0
          %v1062 = vadd.f32 %v1030, 1.0
          %v1063 = vadd.f32 %v1031, 1.0
          %v1064 = vadd.f32 %v1032, 1.0
          %v1065 = vadd.f32 %v1033, 1.0
          %v1066 = vadd.f32 %v1034, 1.0
          %v1067 = vadd.f32 %v1035, 1.0
          %v1068 = vadd.f32 %v1036, 1.0
          %v1069 = vadd.f32 %v1037, 1.0
          %v1070 = vadd.f32 %v1038, 1.0
          %v1071 = vadd.f32 %v1039, 1.0
          %v1072 = vadd.f32 %v1040, 1.0
          %v1073 = vadd.f32 %v1041, 1.0
          %v1074 = vadd.f32 %v1042, 1.0
          %v1075 = vadd.f32 %v1043, 1.0
          %v1076 = vadd.f32 %v1044, 1.0
          %v1077 = vadd.f32 %v1045, 1.0
          %v1078 = vadd.f32 %v1046, 1.0
          %v1079 = vadd.f32 %v1047, 1.0
          %v1080 = vadd.f32 %v1048, 1.0
          %v1081 = vadd.f32 %v1049, 1.0
          %v1082 = vadd.f32 %v1050, 1.0
          %v1083 = vadd.f32 %v1051, 1.0
          %v1084 = vmul.f32 %v956, %v1052
          %v1085 = vmul.f32 %v957, %v1053
          %v1086 = vmul.f32 %v958, %v1054
          %v1087 = vmul.f32 %v959, %v1055
          %v1088 = vmul.f32 %v960, %v1056
          %v1089 = vmul.f32 %v961, %v1057
          %v1090 = vmul.f32 %v962, %v1058
          %v1091 = vmul.f32 %v963, %v1059
          %v1092 = vmul.f32 %v964, %v1060
          %v1093 = vmul.f32 %v965, %v1061
          %v1094 = vmul.f32 %v966, %v1062
          %v1095 = vmul.f32 %v967, %v1063
          %v1096 = vmul.f32 %v968, %v1064
          %v1097 = vmul.f32 %v969, %v1065
          %v1098 = vmul.f32 %v970, %v1066
          %v1099 = vmul.f32 %v971, %v1067
          %v1100 = vmul.f32 %v972, %v1068
          %v1101 = vmul.f32 %v973, %v1069
          %v1102 = vmul.f32 %v974, %v1070
          %v1103 = vmul.f32 %v975, %v1071
          %v1104 = vmul.f32 %v976, %v1072
          %v1105 = vmul.f32 %v977, %v1073
          %v1106 = vmul.f32 %v978, %v1074
          %v1107 = vmul.f32 %v979, %v1075
          %v1108 = vmul.f32 %v980, %v1076
          %v1109 = vmul.f32 %v981, %v1077
          %v1110 = vmul.f32 %v982, %v1078
          %v1111 = vmul.f32 %v983, %v1079
          %v1112 = vmul.f32 %v984, %v1080
          %v1113 = vmul.f32 %v985, %v1081
          %v1114 = vmul.f32 %v986, %v1082
          %v1115 = vmul.f32 %v987, %v1083
          %s1116 = smul.u32 %s23, 32
          %s1117 = smul.addr %s1116, 8
          %s1118 = scalar_lea.vmem [#allocation3], %s1117
          %1119 = vst [vmem:[%s1118] sm:$0xff] %v1084
          %1120 = vst [vmem:[%s1118 + $0x8] sm:$0xff] %v1085
          %1121 = vst [vmem:[%s1118 + $0x10] sm:$0xff] %v1086
          %1122 = vst [vmem:[%s1118 + $0x18] sm:$0xff] %v1087
          %1123 = vst [vmem:[%s1118 + $0x20] sm:$0xff] %v1088
          %1124 = vst [vmem:[%s1118 + $0x28] sm:$0xff] %v1089
          %1125 = vst [vmem:[%s1118 + $0x30] sm:$0xff] %v1090
          %1126 = vst [vmem:[%s1118 + $0x38] sm:$0xff] %v1091
          %1127 = vst [vmem:[%s1118 + $0x40] sm:$0xff] %v1092
          %1128 = vst [vmem:[%s1118 + $0x48] sm:$0xff] %v1093
          %1129 = vst [vmem:[%s1118 + $0x50] sm:$0xff] %v1094
          %1130 = vst [vmem:[%s1118 + $0x58] sm:$0xff] %v1095
          %1131 = vst [vmem:[%s1118 + $0x60] sm:$0xff] %v1096
          %1132 = vst [vmem:[%s1118 + $0x68] sm:$0xff] %v1097
          %1133 = vst [vmem:[%s1118 + $0x70] sm:$0xff] %v1098
          %1134 = vst [vmem:[%s1118 + $0x78] sm:$0xff] %v1099
          %1135 = vst [vmem:[%s1118 + $0x80] sm:$0xff] %v1100
          %1136 = vst [vmem:[%s1118 + $0x88] sm:$0xff] %v1101
          %1137 = vst [vmem:[%s1118 + $0x90] sm:$0xff] %v1102
          %1138 = vst [vmem:[%s1118 + $0x98] sm:$0xff] %v1103
          %1139 = vst [vmem:[%s1118 + $0xa0] sm:$0xff] %v1104
          %1140 = vst [vmem:[%s1118 + $0xa8] sm:$0xff] %v1105
          %1141 = vst [vmem:[%s1118 + $0xb0] sm:$0xff] %v1106
          %1142 = vst [vmem:[%s1118 + $0xb8] sm:$0xff] %v1107
          %1143 = vst [vmem:[%s1118 + $0xc0] sm:$0xff] %v1108
          %1144 = vst [vmem:[%s1118 + $0xc8] sm:$0xff] %v1109
          %1145 = vst [vmem:[%s1118 + $0xd0] sm:$0xff] %v1110
          %1146 = vst [vmem:[%s1118 + $0xd8] sm:$0xff] %v1111
          %1147 = vst [vmem:[%s1118 + $0xe0] sm:$0xff] %v1112
          %1148 = vst [vmem:[%s1118 + $0xe8] sm:$0xff] %v1113
          %1149 = vst [vmem:[%s1118 + $0xf0] sm:$0xff] %v1114
          %1150 = vst [vmem:[%s1118 + $0xf8] sm:$0xff] %v1115
        $region94: #{mm_projector.1} parent=77 // pred_fallthru
          _
        %v1151 = vld [vmem:[#allocation2] sm:$0xff]
        %v1152 = vld [vmem:[#allocation2 + $0x8] sm:$0xff]
        %v1153 = vld [vmem:[#allocation2 + $0x10] sm:$0xff]
        %v1154 = vld [vmem:[#allocation2 + $0x18] sm:$0xff]
        %v1155 = vld [vmem:[#allocation2 + $0x20] sm:$0xff]
        %v1156 = vld [vmem:[#allocation2 + $0x28] sm:$0xff]
        %v1157 = vld [vmem:[#allocation2 + $0x30] sm:$0xff]
        %v1158 = vld [vmem:[#allocation2 + $0x38] sm:$0xff]
        %v1159 = vld [vmem:[#allocation2 + $0x40] sm:$0xff]
        %v1160 = vld [vmem:[#allocation2 + $0x48] sm:$0xff]
        %v1161 = vld [vmem:[#allocation2 + $0x50] sm:$0xff]
        %v1162 = vld [vmem:[#allocation2 + $0x58] sm:$0xff]
        %v1163 = vld [vmem:[#allocation2 + $0x60] sm:$0xff]
        %v1164 = vld [vmem:[#allocation2 + $0x68] sm:$0xff]
        %v1165 = vld [vmem:[#allocation2 + $0x70] sm:$0xff]
        %v1166 = vld [vmem:[#allocation2 + $0x78] sm:$0xff]
        %v1167 = vld [vmem:[#allocation2 + $0x80] sm:$0xff]
        %v1168 = vld [vmem:[#allocation2 + $0x88] sm:$0xff]
        %v1169 = vld [vmem:[#allocation2 + $0x90] sm:$0xff]
        %v1170 = vld [vmem:[#allocation2 + $0x98] sm:$0xff]
        %v1171 = vld [vmem:[#allocation2 + $0xa0] sm:$0xff]
        %v1172 = vld [vmem:[#allocation2 + $0xa8] sm:$0xff]
        %v1173 = vld [vmem:[#allocation2 + $0xb0] sm:$0xff]
        %v1174 = vld [vmem:[#allocation2 + $0xb8] sm:$0xff]
        %v1175 = vld [vmem:[#allocation2 + $0xc0] sm:$0xff]
        %v1176 = vld [vmem:[#allocation2 + $0xc8] sm:$0xff]
        %v1177 = vld [vmem:[#allocation2 + $0xd0] sm:$0xff]
        %v1178 = vld [vmem:[#allocation2 + $0xd8] sm:$0xff]
        %v1179 = vld [vmem:[#allocation2 + $0xe0] sm:$0xff]
        %v1180 = vld [vmem:[#allocation2 + $0xe8] sm:$0xff]
        %v1181 = vld [vmem:[#allocation2 + $0xf0] sm:$0xff]
        %v1182 = vld [vmem:[#allocation2 + $0xf8] sm:$0xff]
        %s1183 = smul.u32 %s23, 32
        %s1184 = smul.addr %s1183, 8
        %s1185 = scalar_lea.vmem [#allocation3], %s1184
        %v1186 = vld [vmem:[%s1185] sm:$0xff]
        %v1187 = vld [vmem:[%s1185 + $0x8] sm:$0xff]
        %v1188 = vld [vmem:[%s1185 + $0x10] sm:$0xff]
        %v1189 = vld [vmem:[%s1185 + $0x18] sm:$0xff]
        %v1190 = vld [vmem:[%s1185 + $0x20] sm:$0xff]
        %v1191 = vld [vmem:[%s1185 + $0x28] sm:$0xff]
        %v1192 = vld [vmem:[%s1185 + $0x30] sm:$0xff]
        %v1193 = vld [vmem:[%s1185 + $0x38] sm:$0xff]
        %v1194 = vld [vmem:[%s1185 + $0x40] sm:$0xff]
        %v1195 = vld [vmem:[%s1185 + $0x48] sm:$0xff]
        %v1196 = vld [vmem:[%s1185 + $0x50] sm:$0xff]
        %v1197 = vld [vmem:[%s1185 + $0x58] sm:$0xff]
        %v1198 = vld [vmem:[%s1185 + $0x60] sm:$0xff]
        %v1199 = vld [vmem:[%s1185 + $0x68] sm:$0xff]
        %v1200 = vld [vmem:[%s1185 + $0x70] sm:$0xff]
        %v1201 = vld [vmem:[%s1185 + $0x78] sm:$0xff]
        %v1202 = vld [vmem:[%s1185 + $0x80] sm:$0xff]
        %v1203 = vld [vmem:[%s1185 + $0x88] sm:$0xff]
        %v1204 = vld [vmem:[%s1185 + $0x90] sm:$0xff]
        %v1205 = vld [vmem:[%s1185 + $0x98] sm:$0xff]
        %v1206 = vld [vmem:[%s1185 + $0xa0] sm:$0xff]
        %v1207 = vld [vmem:[%s1185 + $0xa8] sm:$0xff]
        %v1208 = vld [vmem:[%s1185 + $0xb0] sm:$0xff]
        %v1209 = vld [vmem:[%s1185 + $0xb8] sm:$0xff]
        %v1210 = vld [vmem:[%s1185 + $0xc0] sm:$0xff]
        %v1211 = vld [vmem:[%s1185 + $0xc8] sm:$0xff]
        %v1212 = vld [vmem:[%s1185 + $0xd0] sm:$0xff]
        %v1213 = vld [vmem:[%s1185 + $0xd8] sm:$0xff]
        %v1214 = vld [vmem:[%s1185 + $0xe0] sm:$0xff]
        %v1215 = vld [vmem:[%s1185 + $0xe8] sm:$0xff]
        %v1216 = vld [vmem:[%s1185 + $0xf0] sm:$0xff]
        %v1217 = vld [vmem:[%s1185 + $0xf8] sm:$0xff]
        %v1218 = vld [vmem:[%s575] sm:$0xff]
        %v1219 = vld [vmem:[%s575 + $0x8] sm:$0xff]
        %v1220 = vld [vmem:[%s575 + $0x10] sm:$0xff]
        %v1221 = vld [vmem:[%s575 + $0x18] sm:$0xff]
        %v1222 = vld [vmem:[%s575 + $0x20] sm:$0xff]
        %v1223 = vld [vmem:[%s575 + $0x28] sm:$0xff]
        %v1224 = vld [vmem:[%s575 + $0x30] sm:$0xff]
        %v1225 = vld [vmem:[%s575 + $0x38] sm:$0xff]
        %v1226 = vld [vmem:[%s575 + $0x40] sm:$0xff]
        %v1227 = vld [vmem:[%s575 + $0x48] sm:$0xff]
        %v1228 = vld [vmem:[%s575 + $0x50] sm:$0xff]
        %v1229 = vld [vmem:[%s575 + $0x58] sm:$0xff]
        %v1230 = vld [vmem:[%s575 + $0x60] sm:$0xff]
        %v1231 = vld [vmem:[%s575 + $0x68] sm:$0xff]
        %v1232 = vld [vmem:[%s575 + $0x70] sm:$0xff]
        %v1233 = vld [vmem:[%s575 + $0x78] sm:$0xff]
        %v1234 = vld [vmem:[%s575 + $0x80] sm:$0xff]
        %v1235 = vld [vmem:[%s575 + $0x88] sm:$0xff]
        %v1236 = vld [vmem:[%s575 + $0x90] sm:$0xff]
        %v1237 = vld [vmem:[%s575 + $0x98] sm:$0xff]
        %v1238 = vld [vmem:[%s575 + $0xa0] sm:$0xff]
        %v1239 = vld [vmem:[%s575 + $0xa8] sm:$0xff]
        %v1240 = vld [vmem:[%s575 + $0xb0] sm:$0xff]
        %v1241 = vld [vmem:[%s575 + $0xb8] sm:$0xff]
        %v1242 = vld [vmem:[%s575 + $0xc0] sm:$0xff]
        %v1243 = vld [vmem:[%s575 + $0xc8] sm:$0xff]
        %v1244 = vld [vmem:[%s575 + $0xd0] sm:$0xff]
        %v1245 = vld [vmem:[%s575 + $0xd8] sm:$0xff]
        %v1246 = vld [vmem:[%s575 + $0xe0] sm:$0xff]
        %v1247 = vld [vmem:[%s575 + $0xe8] sm:$0xff]
        %v1248 = vld [vmem:[%s575 + $0xf0] sm:$0xff]
        %v1249 = vld [vmem:[%s575 + $0xf8] sm:$0xff]
        %v1250 = vld [vmem:[%s575 + $0x100] sm:$0xff]
        %v1251 = vld [vmem:[%s575 + $0x108] sm:$0xff]
        %v1252 = vld [vmem:[%s575 + $0x110] sm:$0xff]
        %v1253 = vld [vmem:[%s575 + $0x118] sm:$0xff]
        %v1254 = vld [vmem:[%s575 + $0x120] sm:$0xff]
        %v1255 = vld [vmem:[%s575 + $0x128] sm:$0xff]
        %v1256 = vld [vmem:[%s575 + $0x130] sm:$0xff]
        %v1257 = vld [vmem:[%s575 + $0x138] sm:$0xff]
        %v1258 = vld [vmem:[%s575 + $0x140] sm:$0xff]
        %v1259 = vld [vmem:[%s575 + $0x148] sm:$0xff]
        %v1260 = vld [vmem:[%s575 + $0x150] sm:$0xff]
        %v1261 = vld [vmem:[%s575 + $0x158] sm:$0xff]
        %v1262 = vld [vmem:[%s575 + $0x160] sm:$0xff]
        %v1263 = vld [vmem:[%s575 + $0x168] sm:$0xff]
        %v1264 = vld [vmem:[%s575 + $0x170] sm:$0xff]
        %v1265 = vld [vmem:[%s575 + $0x178] sm:$0xff]
        %v1266 = vld [vmem:[%s575 + $0x180] sm:$0xff]
        %v1267 = vld [vmem:[%s575 + $0x188] sm:$0xff]
        %v1268 = vld [vmem:[%s575 + $0x190] sm:$0xff]
        %v1269 = vld [vmem:[%s575 + $0x198] sm:$0xff]
        %v1270 = vld [vmem:[%s575 + $0x1a0] sm:$0xff]
        %v1271 = vld [vmem:[%s575 + $0x1a8] sm:$0xff]
        %v1272 = vld [vmem:[%s575 + $0x1b0] sm:$0xff]
        %v1273 = vld [vmem:[%s575 + $0x1b8] sm:$0xff]
        %v1274 = vld [vmem:[%s575 + $0x1c0] sm:$0xff]
        %v1275 = vld [vmem:[%s575 + $0x1c8] sm:$0xff]
        %v1276 = vld [vmem:[%s575 + $0x1d0] sm:$0xff]
        %v1277 = vld [vmem:[%s575 + $0x1d8] sm:$0xff]
        %v1278 = vld [vmem:[%s575 + $0x1e0] sm:$0xff]
        %v1279 = vld [vmem:[%s575 + $0x1e8] sm:$0xff]
        %v1280 = vld [vmem:[%s575 + $0x1f0] sm:$0xff]
        %v1281 = vld [vmem:[%s575 + $0x1f8] sm:$0xff]
        %1282 = vmatprep.subr.mxu0 %v1219
        %1283 = vmatpush1.msra.mxu0 %v1218
        %1284 = vmatprep.subr.mxu0 %v1221
        %1285 = vmatpush1.msra.mxu0 %v1220
        %1286 = vmatprep.subr.mxu0 %v1223
        %1287 = vmatpush1.msra.mxu0 %v1222
        %1288 = vmatprep.subr.mxu0 %v1225
        %1289 = vmatpush1.msra.mxu0 %v1224
        %1290 = vmatprep.subr.mxu0 %v1227
        %1291 = vmatpush1.msra.mxu0 %v1226
        %1292 = vmatprep.subr.mxu0 %v1229
        %1293 = vmatpush1.msra.mxu0 %v1228
        %1294 = vmatprep.subr.mxu0 %v1231
        %1295 = vmatpush1.msra.mxu0 %v1230
        %1296 = vmatprep.subr.mxu0 %v1233
        %1297 = vmatpush1.msra.mxu0 %v1232
        %1298 = vmatprep.subr.mxu0 %v1235
        %1299 = vmatpush1.msra.mxu0 %v1234
        %1300 = vmatprep.subr.mxu0 %v1237
        %1301 = vmatpush1.msra.mxu0 %v1236
        %1302 = vmatprep.subr.mxu0 %v1239
        %1303 = vmatpush1.msra.mxu0 %v1238
        %1304 = vmatprep.subr.mxu0 %v1241
        %1305 = vmatpush1.msra.mxu0 %v1240
        %1306 = vmatprep.subr.mxu0 %v1243
        %1307 = vmatpush1.msra.mxu0 %v1242
        %1308 = vmatprep.subr.mxu0 %v1245
        %1309 = vmatpush1.msra.mxu0 %v1244
        %1310 = vmatprep.subr.mxu0 %v1247
        %1311 = vmatpush1.msra.mxu0 %v1246
        %1312 = vmatprep.subr.mxu0 %v1249
        %1313 = vmatpush1.msra.mxu0 %v1248
        %1314 = vmatprep.subr.mxu0 %v1251
        %1315 = vmatpush1.msra.mxu0 %v1250
        %1316 = vmatprep.subr.mxu0 %v1253
        %1317 = vmatpush1.msra.mxu0 %v1252
        %1318 = vmatprep.subr.mxu0 %v1255
        %1319 = vmatpush1.msra.mxu0 %v1254
        %1320 = vmatprep.subr.mxu0 %v1257
        %1321 = vmatpush1.msra.mxu0 %v1256
        %1322 = vmatprep.subr.mxu0 %v1259
        %1323 = vmatpush1.msra.mxu0 %v1258
        %1324 = vmatprep.subr.mxu0 %v1261
        %1325 = vmatpush1.msra.mxu0 %v1260
        %1326 = vmatprep.subr.mxu0 %v1263
        %1327 = vmatpush1.msra.mxu0 %v1262
        %1328 = vmatprep.subr.mxu0 %v1265
        %1329 = vmatpush1.msra.mxu0 %v1264
        %1330 = vmatprep.subr.mxu0 %v1267
        %1331 = vmatpush1.msra.mxu0 %v1266
        %1332 = vmatprep.subr.mxu0 %v1269
        %1333 = vmatpush1.msra.mxu0 %v1268
        %1334 = vmatprep.subr.mxu0 %v1271
        %1335 = vmatpush1.msra.mxu0 %v1270
        %1336 = vmatprep.subr.mxu0 %v1273
        %1337 = vmatpush1.msra.mxu0 %v1272
        %1338 = vmatprep.subr.mxu0 %v1275
        %1339 = vmatpush1.msra.mxu0 %v1274
        %1340 = vmatprep.subr.mxu0 %v1277
        %1341 = vmatpush1.msra.mxu0 %v1276
        %1342 = vmatprep.subr.mxu0 %v1279
        %1343 = vmatpush1.msra.mxu0 %v1278
        %1344 = vmatprep.subr.mxu0 %v1281
        %1345 = vmatpush1.msra.mxu0 %v1280
        %1346 = vmatprep.mubr.f32.mxu0 %v1187
        %1347 = vmatmul.mubr.f32.gmra.mrb[0].mxu0 %v1186
        %v1348 = vpop.f32.mrb[0].mxu0
        %v1349 = vadd.f32 0.0, %v1348
        %v1350 = vpop.f32.mrb[0].mxu0
        %v1351 = vadd.f32 0.0, %v1350
        %1352 = vmatprep.mubr.f32.mxu0 %v1189
        %1353 = vmatmul.mubr.f32.gmra.mrb[0].mxu0 %v1188
        %v1354 = vpop.f32.mrb[0].mxu0
        %v1355 = vadd.f32 0.0, %v1354
        %v1356 = vpop.f32.mrb[0].mxu0
        %v1357 = vadd.f32 0.0, %v1356
        %1358 = vmatprep.mubr.f32.mxu0 %v1191
        %1359 = vmatmul.mubr.f32.gmra.mrb[0].mxu0 %v1190
        %v1360 = vpop.f32.mrb[0].mxu0
        %v1361 = vadd.f32 0.0, %v1360
        %v1362 = vpop.f32.mrb[0].mxu0
        %v1363 = vadd.f32 0.0, %v1362
        %1364 = vmatprep.mubr.f32.mxu0 %v1193
        %1365 = vmatmul.mubr.f32.gmra.mrb[0].mxu0 %v1192
        %v1366 = vpop.f32.mrb[0].mxu0
        %v1367 = vadd.f32 0.0, %v1366
        %v1368 = vpop.f32.mrb[0].mxu0
        %v1369 = vadd.f32 0.0, %v1368
        %1370 = vmatprep.mubr.f32.mxu0 %v1195
        %1371 = vmatmul.mubr.f32.gmra.mrb[0].mxu0 %v1194
        %v1372 = vpop.f32.mrb[0].mxu0
        %v1373 = vadd.f32 0.0, %v1372
        %v1374 = vpop.f32.mrb[0].mxu0
        %v1375 = vadd.f32 0.0, %v1374
        %1376 = vmatprep.mubr.f32.mxu0 %v1197
        %1377 = vmatmul.mubr.f32.gmra.mrb[0].mxu0 %v1196
        %v1378 = vpop.f32.mrb[0].mxu0
        %v1379 = vadd.f32 0.0, %v1378
        %v1380 = vpop.f32.mrb[0].mxu0
        %v1381 = vadd.f32 0.0, %v1380
        %1382 = vmatprep.mubr.f32.mxu0 %v1199
        %1383 = vmatmul.mubr.f32.gmra.mrb[0].mxu0 %v1198
        %v1384 = vpop.f32.mrb[0].mxu0
        %v1385 = vadd.f32 0.0, %v1384
        %v1386 = vpop.f32.mrb[0].mxu0
        %v1387 = vadd.f32 0.0, %v1386
        %1388 = vmatprep.mubr.f32.mxu0 %v1201
        %1389 = vmatmul.mubr.f32.gmra.mrb[0].mxu0 %v1200
        %v1390 = vpop.f32.mrb[0].mxu0
        %v1391 = vadd.f32 0.0, %v1390
        %v1392 = vpop.f32.mrb[0].mxu0
        %v1393 = vadd.f32 0.0, %v1392
        %1394 = vmatprep.mubr.f32.mxu0 %v1203
        %1395 = vmatmul.mubr.f32.gmra.mrb[0].mxu0 %v1202
        %v1396 = vpop.f32.mrb[0].mxu0
        %v1397 = vadd.f32 0.0, %v1396
        %v1398 = vpop.f32.mrb[0].mxu0
        %v1399 = vadd.f32 0.0, %v1398
        %1400 = vmatprep.mubr.f32.mxu0 %v1205
        %1401 = vmatmul.mubr.f32.gmra.mrb[0].mxu0 %v1204
        %v1402 = vpop.f32.mrb[0].mxu0
        %v1403 = vadd.f32 0.0, %v1402
        %v1404 = vpop.f32.mrb[0].mxu0
        %v1405 = vadd.f32 0.0, %v1404
        %1406 = vmatprep.mubr.f32.mxu0 %v1207
        %1407 = vmatmul.mubr.f32.gmra.mrb[0].mxu0 %v1206
        %v1408 = vpop.f32.mrb[0].mxu0
        %v1409 = vadd.f32 0.0, %v1408
        %v1410 = vpop.f32.mrb[0].mxu0
        %v1411 = vadd.f32 0.0, %v1410
        %1412 = vmatprep.mubr.f32.mxu0 %v1209
        %1413 = vmatmul.mubr.f32.gmra.mrb[0].mxu0 %v1208
        %v1414 = vpop.f32.mrb[0].mxu0
        %v1415 = vadd.f32 0.0, %v1414
        %v1416 = vpop.f32.mrb[0].mxu0
        %v1417 = vadd.f32 0.0, %v1416
        %1418 = vmatprep.mubr.f32.mxu0 %v1211
        %1419 = vmatmul.mubr.f32.gmra.mrb[0].mxu0 %v1210
        %v1420 = vpop.f32.mrb[0].mxu0
        %v1421 = vadd.f32 0.0, %v1420
        %v1422 = vpop.f32.mrb[0].mxu0
        %v1423 = vadd.f32 0.0, %v1422
        %1424 = vmatprep.mubr.f32.mxu0 %v1213
        %1425 = vmatmul.mubr.f32.gmra.mrb[0].mxu0 %v1212
        %v1426 = vpop.f32.mrb[0].mxu0
        %v1427 = vadd.f32 0.0, %v1426
        %v1428 = vpop.f32.mrb[0].mxu0
        %v1429 = vadd.f32 0.0, %v1428
        %1430 = vmatprep.mubr.f32.mxu0 %v1215
        %1431 = vmatmul.mubr.f32.gmra.mrb[0].mxu0 %v1214
        %v1432 = vpop.f32.mrb[0].mxu0
        %v1433 = vadd.f32 0.0, %v1432
        %v1434 = vpop.f32.mrb[0].mxu0
        %v1435 = vadd.f32 0.0, %v1434
        %1436 = vmatprep.mubr.f32.mxu0 %v1217
        %1437 = vmatmul.mubr.f32.gmra.mrb[0].mxu0 %v1216
        %v1438 = vpop.f32.mrb[0].mxu0
        %v1439 = vadd.f32 0.0, %v1438
        %v1440 = vpop.f32.mrb[0].mxu0
        %v1441 = vadd.f32 0.0, %v1440
        %1442 = vdwg.mxu0
        %v1443 = vadd.f32 %v1151, %v1349
        %v1444 = vadd.f32 %v1152, %v1351
        %v1445 = vadd.f32 %v1153, %v1355
        %v1446 = vadd.f32 %v1154, %v1357
        %v1447 = vadd.f32 %v1155, %v1361
        %v1448 = vadd.f32 %v1156, %v1363
        %v1449 = vadd.f32 %v1157, %v1367
        %v1450 = vadd.f32 %v1158, %v1369
        %v1451 = vadd.f32 %v1159, %v1373
        %v1452 = vadd.f32 %v1160, %v1375
        %v1453 = vadd.f32 %v1161, %v1379
        %v1454 = vadd.f32 %v1162, %v1381
        %v1455 = vadd.f32 %v1163, %v1385
        %v1456 = vadd.f32 %v1164, %v1387
        %v1457 = vadd.f32 %v1165, %v1391
        %v1458 = vadd.f32 %v1166, %v1393
        %v1459 = vadd.f32 %v1167, %v1397
        %v1460 = vadd.f32 %v1168, %v1399
        %v1461 = vadd.f32 %v1169, %v1403
        %v1462 = vadd.f32 %v1170, %v1405
        %v1463 = vadd.f32 %v1171, %v1409
        %v1464 = vadd.f32 %v1172, %v1411
        %v1465 = vadd.f32 %v1173, %v1415
        %v1466 = vadd.f32 %v1174, %v1417
        %v1467 = vadd.f32 %v1175, %v1421
        %v1468 = vadd.f32 %v1176, %v1423
        %v1469 = vadd.f32 %v1177, %v1427
        %v1470 = vadd.f32 %v1178, %v1429
        %v1471 = vadd.f32 %v1179, %v1433
        %v1472 = vadd.f32 %v1180, %v1435
        %v1473 = vadd.f32 %v1181, %v1439
        %v1474 = vadd.f32 %v1182, %v1441
        %1475 = vst [vmem:[#allocation2] sm:$0xff] %v1443
        %1476 = vst [vmem:[#allocation2 + $0x8] sm:$0xff] %v1444
        %1477 = vst [vmem:[#allocation2 + $0x10] sm:$0xff] %v1445
        %1478 = vst [vmem:[#allocation2 + $0x18] sm:$0xff] %v1446
        %1479 = vst [vmem:[#allocation2 + $0x20] sm:$0xff] %v1447
        %1480 = vst [vmem:[#allocation2 + $0x28] sm:$0xff] %v1448
        %1481 = vst [vmem:[#allocation2 + $0x30] sm:$0xff] %v1449
        %1482 = vst [vmem:[#allocation2 + $0x38] sm:$0xff] %v1450
        %1483 = vst [vmem:[#allocation2 + $0x40] sm:$0xff] %v1451
        %1484 = vst [vmem:[#allocation2 + $0x48] sm:$0xff] %v1452
        %1485 = vst [vmem:[#allocation2 + $0x50] sm:$0xff] %v1453
        %1486 = vst [vmem:[#allocation2 + $0x58] sm:$0xff] %v1454
        %1487 = vst [vmem:[#allocation2 + $0x60] sm:$0xff] %v1455
        %1488 = vst [vmem:[#allocation2 + $0x68] sm:$0xff] %v1456
        %1489 = vst [vmem:[#allocation2 + $0x70] sm:$0xff] %v1457
        %1490 = vst [vmem:[#allocation2 + $0x78] sm:$0xff] %v1458
        %1491 = vst [vmem:[#allocation2 + $0x80] sm:$0xff] %v1459
        %1492 = vst [vmem:[#allocation2 + $0x88] sm:$0xff] %v1460
        %1493 = vst [vmem:[#allocation2 + $0x90] sm:$0xff] %v1461
        %1494 = vst [vmem:[#allocation2 + $0x98] sm:$0xff] %v1462
        %1495 = vst [vmem:[#allocation2 + $0xa0] sm:$0xff] %v1463
        %1496 = vst [vmem:[#allocation2 + $0xa8] sm:$0xff] %v1464
        %1497 = vst [vmem:[#allocation2 + $0xb0] sm:$0xff] %v1465
        %1498 = vst [vmem:[#allocation2 + $0xb8] sm:$0xff] %v1466
        %1499 = vst [vmem:[#allocation2 + $0xc0] sm:$0xff] %v1467
        %1500 = vst [vmem:[#allocation2 + $0xc8] sm:$0xff] %v1468
        %1501 = vst [vmem:[#allocation2 + $0xd0] sm:$0xff] %v1469
        %1502 = vst [vmem:[#allocation2 + $0xd8] sm:$0xff] %v1470
        %1503 = vst [vmem:[#allocation2 + $0xe0] sm:$0xff] %v1471
        %1504 = vst [vmem:[#allocation2 + $0xe8] sm:$0xff] %v1472
        %1505 = vst [vmem:[#allocation2 + $0xf0] sm:$0xff] %v1473
        %1506 = vst [vmem:[#allocation2 + $0xf8] sm:$0xff] %v1474
        %p1507 = scmp.eq.s32.totalorder %s23, 1
        // Predicated region
        $region95: #{mm_projector.1} parent=77 // pred_check
          %p1508 = pneg %p1507
        $region96: #{mm_projector.1} parent=77 // pred_check_branch
          %1510 = sbr.rel (%p1508) target = $region98
        $region97: #{mm_projector.1} parent=77 // pred_region
          %v1511 = vld [vmem:[#allocation2] sm:$0xff]
          %v1512 = vld [vmem:[#allocation2 + $0x8] sm:$0xff]
          %v1513 = vld [vmem:[#allocation2 + $0x10] sm:$0xff]
          %v1514 = vld [vmem:[#allocation2 + $0x18] sm:$0xff]
          %v1515 = vld [vmem:[#allocation2 + $0x20] sm:$0xff]
          %v1516 = vld [vmem:[#allocation2 + $0x28] sm:$0xff]
          %v1517 = vld [vmem:[#allocation2 + $0x30] sm:$0xff]
          %v1518 = vld [vmem:[#allocation2 + $0x38] sm:$0xff]
          %v1519 = vld [vmem:[#allocation2 + $0x40] sm:$0xff]
          %v1520 = vld [vmem:[#allocation2 + $0x48] sm:$0xff]
          %v1521 = vld [vmem:[#allocation2 + $0x50] sm:$0xff]
          %v1522 = vld [vmem:[#allocation2 + $0x58] sm:$0xff]
          %v1523 = vld [vmem:[#allocation2 + $0x60] sm:$0xff]
          %v1524 = vld [vmem:[#allocation2 + $0x68] sm:$0xff]
          %v1525 = vld [vmem:[#allocation2 + $0x70] sm:$0xff]
          %v1526 = vld [vmem:[#allocation2 + $0x78] sm:$0xff]
          %v1527 = vld [vmem:[#allocation2 + $0x80] sm:$0xff]
          %v1528 = vld [vmem:[#allocation2 + $0x88] sm:$0xff]
          %v1529 = vld [vmem:[#allocation2 + $0x90] sm:$0xff]
          %v1530 = vld [vmem:[#allocation2 + $0x98] sm:$0xff]
          %v1531 = vld [vmem:[#allocation2 + $0xa0] sm:$0xff]
          %v1532 = vld [vmem:[#allocation2 + $0xa8] sm:$0xff]
          %v1533 = vld [vmem:[#allocation2 + $0xb0] sm:$0xff]
          %v1534 = vld [vmem:[#allocation2 + $0xb8] sm:$0xff]
          %v1535 = vld [vmem:[#allocation2 + $0xc0] sm:$0xff]
          %v1536 = vld [vmem:[#allocation2 + $0xc8] sm:$0xff]
          %v1537 = vld [vmem:[#allocation2 + $0xd0] sm:$0xff]
          %v1538 = vld [vmem:[#allocation2 + $0xd8] sm:$0xff]
          %v1539 = vld [vmem:[#allocation2 + $0xe0] sm:$0xff]
          %v1540 = vld [vmem:[#allocation2 + $0xe8] sm:$0xff]
          %v1541 = vld [vmem:[#allocation2 + $0xf0] sm:$0xff]
          %v1542 = vld [vmem:[#allocation2 + $0xf8] sm:$0xff]
          %v1543 = vld [vmem:[%s643] sm:$0x3]
          %v1545 = vlaneseq
          %v1546 = vshrl.u32 %v1545, 7
          %v1547 = vsub.s32 0, %v1546
          %v1548 = vrot.slane %v1543, %v1547
          %v1549 = vlaneseq
          %v1550 = vshrl.u32 %v1549, 7
          %v1551 = vsub.s32 1, %v1550
          %v1552 = vrot.slane %v1543, %v1551
          %v1555 = vadd.f32 %v1511, %v1548
          %v1556 = vadd.f32 %v1512, %v1552
          %v1557 = vadd.f32 %v1513, %v1548
          %v1558 = vadd.f32 %v1514, %v1552
          %v1559 = vadd.f32 %v1515, %v1548
          %v1560 = vadd.f32 %v1516, %v1552
          %v1561 = vadd.f32 %v1517, %v1548
          %v1562 = vadd.f32 %v1518, %v1552
          %v1563 = vadd.f32 %v1519, %v1548
          %v1564 = vadd.f32 %v1520, %v1552
          %v1565 = vadd.f32 %v1521, %v1548
          %v1566 = vadd.f32 %v1522, %v1552
          %v1567 = vadd.f32 %v1523, %v1548
          %v1568 = vadd.f32 %v1524, %v1552
          %v1569 = vadd.f32 %v1525, %v1548
          %v1570 = vadd.f32 %v1526, %v1552
          %v1571 = vadd.f32 %v1527, %v1548
          %v1572 = vadd.f32 %v1528, %v1552
          %v1573 = vadd.f32 %v1529, %v1548
          %v1574 = vadd.f32 %v1530, %v1552
          %v1575 = vadd.f32 %v1531, %v1548
          %v1576 = vadd.f32 %v1532, %v1552
          %v1577 = vadd.f32 %v1533, %v1548
          %v1578 = vadd.f32 %v1534, %v1552
          %v1579 = vadd.f32 %v1535, %v1548
          %v1580 = vadd.f32 %v1536, %v1552
          %v1581 = vadd.f32 %v1537, %v1548
          %v1582 = vadd.f32 %v1538, %v1552
          %v1583 = vadd.f32 %v1539, %v1548
          %v1584 = vadd.f32 %v1540, %v1552
          %v1585 = vadd.f32 %v1541, %v1548
          %v1586 = vadd.f32 %v1542, %v1552
          %1587 = vst [vmem:[%s618] sm:$0xff] %v1555
          %1588 = vst [vmem:[%s618 + $0x8] sm:$0xff] %v1556
          %1589 = vst [vmem:[%s618 + $0x10] sm:$0xff] %v1557
          %1590 = vst [vmem:[%s618 + $0x18] sm:$0xff] %v1558
          %1591 = vst [vmem:[%s618 + $0x20] sm:$0xff] %v1559
          %1592 = vst [vmem:[%s618 + $0x28] sm:$0xff] %v1560
          %1593 = vst [vmem:[%s618 + $0x30] sm:$0xff] %v1561
          %1594 = vst [vmem:[%s618 + $0x38] sm:$0xff] %v1562
          %1595 = vst [vmem:[%s618 + $0x40] sm:$0xff] %v1563
          %1596 = vst [vmem:[%s618 + $0x48] sm:$0xff] %v1564
          %1597 = vst [vmem:[%s618 + $0x50] sm:$0xff] %v1565
          %1598 = vst [vmem:[%s618 + $0x58] sm:$0xff] %v1566
          %1599 = vst [vmem:[%s618 + $0x60] sm:$0xff] %v1567
          %1600 = vst [vmem:[%s618 + $0x68] sm:$0xff] %v1568
          %1601 = vst [vmem:[%s618 + $0x70] sm:$0xff] %v1569
          %1602 = vst [vmem:[%s618 + $0x78] sm:$0xff] %v1570
          %1603 = vst [vmem:[%s618 + $0x80] sm:$0xff] %v1571
          %1604 = vst [vmem:[%s618 + $0x88] sm:$0xff] %v1572
          %1605 = vst [vmem:[%s618 + $0x90] sm:$0xff] %v1573
          %1606 = vst [vmem:[%s618 + $0x98] sm:$0xff] %v1574
          %1607 = vst [vmem:[%s618 + $0xa0] sm:$0xff] %v1575
          %1608 = vst [vmem:[%s618 + $0xa8] sm:$0xff] %v1576
          %1609 = vst [vmem:[%s618 + $0xb0] sm:$0xff] %v1577
          %1610 = vst [vmem:[%s618 + $0xb8] sm:$0xff] %v1578
          %1611 = vst [vmem:[%s618 + $0xc0] sm:$0xff] %v1579
          %1612 = vst [vmem:[%s618 + $0xc8] sm:$0xff] %v1580
          %1613 = vst [vmem:[%s618 + $0xd0] sm:$0xff] %v1581
          %1614 = vst [vmem:[%s618 + $0xd8] sm:$0xff] %v1582
          %1615 = vst [vmem:[%s618 + $0xe0] sm:$0xff] %v1583
          %1616 = vst [vmem:[%s618 + $0xe8] sm:$0xff] %v1584
          %1617 = vst [vmem:[%s618 + $0xf0] sm:$0xff] %v1585
          %1618 = vst [vmem:[%s618 + $0xf8] sm:$0xff] %v1586
        $region98: #{mm_projector.1} parent=77 // pred_fallthru
          _
        %s1619 = sand.u32 %s185, 1
        %s1620 = sand.u32 %s185, 1
        %s1621 = smul.addr %s1620, 256
        %s1622 = scalar_lea.vmem [#allocation6], %s1621
        // Predicated region
        $region99: #{mm_projector.1} parent=77 // pred_check
          %p1623 = pneg %p195
        $region100: #{mm_projector.1} parent=77 // pred_check_branch
          %1625 = sbr.rel (%p1623) target = $region102
        $region101: #{mm_projector.1} parent=77 // pred_region
          %s1626 = smul.u32 16, %s21
          %s1627 = smul.u32 2, %s22
          %s1628 = smul.addr %s1626, 4
          %s1629 = sadd.s32 %s1627, %s1628
          %s1630 = smul.addr %s1629, 8
          %s1631 = scalar_lea.vmem %s5, %s1630
          // Predicated region
          $region103: #{mm_projector.1} parent=101 // pred_check
            _
          $region104: #{mm_projector.1} parent=101 // pred_check_branch
            %1633 = sbr.rel (0) target = $region106
          $region105: #{mm_projector.1} parent=101 // pred_region
            // Predicated region
            $region107: #{mm_projector.1} parent=105 // pred_check
              _
            $region108: #{mm_projector.1} parent=105 // pred_check_branch
              %1635 = sbr.rel (0) target = $region110
            $region109: #{mm_projector.1} parent=105 // pred_region
              loop: start=0, step=1, limit=1
              $region111: #{mm_projector.1} parent=109 // loop_pre_header
                _
              $region112: #{mm_projector.1} parent=109 // loop_header
                %s1637 = sphi 0, %s1641
                %p1638 = scmp.ge.s32.totalorder %s1637, 1
                %s1642 = sphi %s1622, %s1622
                %s1643 = sphi %s1631, %s1631
              $region113: #{mm_projector.1} parent=109 // loop_header_branch
                %1640 = sbr.rel (%p1638) target = $region117
              $region114: #{mm_projector.1} parent=109 // loop_body
                %v1644 = vld [vmem:[%s1642] sm:$0xff]
                %1645 = vst [vmem:[%s1643] sm:$0xff] %v1644
                %v1646 = vld [vmem:[%s1642 + $0x8] sm:$0xff]
                %1647 = vst [vmem:[%s1643 + $0x8] sm:$0xff] %v1646
                %v1648 = vld [vmem:[%s1642 + $0x10] sm:$0xff]
                %1649 = vst [vmem:[%s1643 + $0x20] sm:$0xff] %v1648
                %v1650 = vld [vmem:[%s1642 + $0x18] sm:$0xff]
                %1651 = vst [vmem:[%s1643 + $0x28] sm:$0xff] %v1650
                %v1652 = vld [vmem:[%s1642 + $0x20] sm:$0xff]
                %1653 = vst [vmem:[%s1643 + $0x40] sm:$0xff] %v1652
                %v1654 = vld [vmem:[%s1642 + $0x28] sm:$0xff]
                %1655 = vst [vmem:[%s1643 + $0x48] sm:$0xff] %v1654
                %v1656 = vld [vmem:[%s1642 + $0x30] sm:$0xff]
                %1657 = vst [vmem:[%s1643 + $0x60] sm:$0xff] %v1656
                %v1658 = vld [vmem:[%s1642 + $0x38] sm:$0xff]
                %1659 = vst [vmem:[%s1643 + $0x68] sm:$0xff] %v1658
                %v1660 = vld [vmem:[%s1642 + $0x40] sm:$0xff]
                %1661 = vst [vmem:[%s1643 + $0x80] sm:$0xff] %v1660
                %v1662 = vld [vmem:[%s1642 + $0x48] sm:$0xff]
                %1663 = vst [vmem:[%s1643 + $0x88] sm:$0xff] %v1662
                %v1664 = vld [vmem:[%s1642 + $0x50] sm:$0xff]
                %1665 = vst [vmem:[%s1643 + $0xa0] sm:$0xff] %v1664
                %v1666 = vld [vmem:[%s1642 + $0x58] sm:$0xff]
                %1667 = vst [vmem:[%s1643 + $0xa8] sm:$0xff] %v1666
                %v1668 = vld [vmem:[%s1642 + $0x60] sm:$0xff]
                %1669 = vst [vmem:[%s1643 + $0xc0] sm:$0xff] %v1668
                %v1670 = vld [vmem:[%s1642 + $0x68] sm:$0xff]
                %1671 = vst [vmem:[%s1643 + $0xc8] sm:$0xff] %v1670
                %v1672 = vld [vmem:[%s1642 + $0x70] sm:$0xff]
                %1673 = vst [vmem:[%s1643 + $0xe0] sm:$0xff] %v1672
                %v1674 = vld [vmem:[%s1642 + $0x78] sm:$0xff]
                %1675 = vst [vmem:[%s1643 + $0xe8] sm:$0xff] %v1674
                %v1676 = vld [vmem:[%s1642 + $0x80] sm:$0xff]
                %1677 = vst [vmem:[%s1643 + $0x100] sm:$0xff] %v1676
                %v1678 = vld [vmem:[%s1642 + $0x88] sm:$0xff]
                %1679 = vst [vmem:[%s1643 + $0x108] sm:$0xff] %v1678
                %v1680 = vld [vmem:[%s1642 + $0x90] sm:$0xff]
                %1681 = vst [vmem:[%s1643 + $0x120] sm:$0xff] %v1680
                %v1682 = vld [vmem:[%s1642 + $0x98] sm:$0xff]
                %1683 = vst [vmem:[%s1643 + $0x128] sm:$0xff] %v1682
                %v1684 = vld [vmem:[%s1642 + $0xa0] sm:$0xff]
                %1685 = vst [vmem:[%s1643 + $0x140] sm:$0xff] %v1684
                %v1686 = vld [vmem:[%s1642 + $0xa8] sm:$0xff]
                %1687 = vst [vmem:[%s1643 + $0x148] sm:$0xff] %v1686
                %v1688 = vld [vmem:[%s1642 + $0xb0] sm:$0xff]
                %1689 = vst [vmem:[%s1643 + $0x160] sm:$0xff] %v1688
                %v1690 = vld [vmem:[%s1642 + $0xb8] sm:$0xff]
                %1691 = vst [vmem:[%s1643 + $0x168] sm:$0xff] %v1690
                %v1692 = vld [vmem:[%s1642 + $0xc0] sm:$0xff]
                %1693 = vst [vmem:[%s1643 + $0x180] sm:$0xff] %v1692
                %v1694 = vld [vmem:[%s1642 + $0xc8] sm:$0xff]
                %1695 = vst [vmem:[%s1643 + $0x188] sm:$0xff] %v1694
                %v1696 = vld [vmem:[%s1642 + $0xd0] sm:$0xff]
                %1697 = vst [vmem:[%s1643 + $0x1a0] sm:$0xff] %v1696
                %v1698 = vld [vmem:[%s1642 + $0xd8] sm:$0xff]
                %1699 = vst [vmem:[%s1643 + $0x1a8] sm:$0xff] %v1698
                %v1700 = vld [vmem:[%s1642 + $0xe0] sm:$0xff]
                %1701 = vst [vmem:[%s1643 + $0x1c0] sm:$0xff] %v1700
                %v1702 = vld [vmem:[%s1642 + $0xe8] sm:$0xff]
                %1703 = vst [vmem:[%s1643 + $0x1c8] sm:$0xff] %v1702
                %v1704 = vld [vmem:[%s1642 + $0xf0] sm:$0xff]
                %1705 = vst [vmem:[%s1643 + $0x1e0] sm:$0xff] %v1704
                %v1706 = vld [vmem:[%s1642 + $0xf8] sm:$0xff]
                %1707 = vst [vmem:[%s1643 + $0x1e8] sm:$0xff] %v1706
              $region115: #{mm_projector.1} parent=109 // loop_footer
                %s1641 = sadd.s32 1, %s1637
              $region116: #{mm_projector.1} parent=109 // loop_footer_branch
                %1636 = sbr.rel target = $region112
              $region117: #{mm_projector.1} parent=109 // loop_exit
                _
            $region110: #{mm_projector.1} parent=105 // pred_fallthru
              _
            // Predicated region
            $region118: #{mm_projector.1} parent=105 // pred_check
              _
            $region119: #{mm_projector.1} parent=105 // pred_check_branch
              %1709 = sbr.rel target = $region121
            $region120: #{mm_projector.1} parent=105 // pred_region
              _
            $region121: #{mm_projector.1} parent=105 // pred_fallthru
              _
          $region106: #{mm_projector.1} parent=101 // pred_fallthru
            _
          %1710 = vnop
        $region102: #{mm_projector.1} parent=77 // pred_fallthru
          _
      $region78: #{mm_projector.1} parent=5 // pred_fallthru
        _
      %p1711 = scmp.le.s32.totalorder 2, %s11
      // Predicated region
      $region122: #{mm_projector.1} parent=5 // pred_check
        %p1712 = pneg %p1711
      $region123: #{mm_projector.1} parent=5 // pred_check_branch
        %1714 = sbr.rel (%p1712) target = $region125
      $region124: #{mm_projector.1} parent=5 // pred_region
        %s1715 = ssub.s32 %s11, 2
        // Predicated region
        $region126: #{mm_projector.1} parent=124 // pred_check
          %p1716 = pneg %p201
        $region127: #{mm_projector.1} parent=124 // pred_check_branch
          %1718 = sbr.rel (%p1716) target = $region129
        $region128: #{mm_projector.1} parent=124 // pred_region
          %s1719 = sand.u32 %s186, 1
          %s1720 = sand.u32 %s186, 1
          %s1721 = smul.addr %s1720, 256
          %s1722 = scalar_lea.vmem [#allocation6], %s1721
        $region129: #{mm_projector.1} parent=124 // pred_fallthru
          _
      $region125: #{mm_projector.1} parent=5 // pred_fallthru
        _
    $region6: #{mm_projector.1} parent=1 // loop_footer
      %s15 = sadd.s32 1, %s11
    $region7: #{mm_projector.1} parent=1 // loop_footer_branch
      %10 = sbr.rel target = $region3
    $region8: #{mm_projector.1} parent=1 // loop_exit
      _

</llo_original>
